<compile_context>
chip_gen: v5e
topology: v5e:2x2
jax: 0.10.0
libtpu: 0.0.40
codegen_flags: <defaults>
</compile_context>

<pallas_src>
import functools

import jax
import jax.numpy as jnp
import numpy as np
from jax import lax
from jax.experimental import pallas as pl
from jax.experimental.pallas import tpu as pltpu

BN_EPS = 1e-5


# --------------------------- per-layer Pallas kernel ------------------------
def _layer_kernel(x_ref, w_ref, g_ref, beta_ref, o_ref,
                  sum_ref, sq_ref, scale_ref, shift_ref,
                  *, n_rows_total):
    """Conv1d(k=3, pad=1, no bias) + BatchNorm1d(train stats) + ReLU.

    Grid = (phase, tile), both sequential ("arbitrary"):
      phase 0: conv for this batch tile, accumulate per-channel sum / sum^2.
      phase 1: recompute conv, apply folded BN affine + ReLU, write output.

    x_ref    : (Btile, L, Cin)   f32, channels last
    w_ref    : (3, Cin, Cout)    f32, tap k pairs with x[l + k - 1]
    g_ref    : (1, Cout)         f32 BN gamma
    beta_ref : (1, Cout)         f32 BN beta
    o_ref    : (Btile, L, Cout)  f32
    scratch  : sum / sumsq / scale / shift, each (1, Cout) f32, persistent.
    """
    phase = pl.program_id(0)
    tile = pl.program_id(1)
    n_tiles = pl.num_programs(1)

    btile, L, cin = x_ref.shape
    cout = o_ref.shape[-1]
    rows = btile * L

    # ---- Conv1d as three accumulated MXU matmuls (recomputed each phase). ----
    x2 = x_ref[...].reshape(rows, cin)                              # (rows, Cin)
    # Position of each row within its length-L sample (iota on L axis, no %).
    pos = lax.broadcasted_iota(jnp.int32, (btile, L, 1), 1).reshape(rows, 1)
    # Shifted operands via non-negative XLU sublane rolls + boundary masks
    # (pltpu.roll requires shift >= 0, so x[l+1] uses shift = rows - 1).
    # Each length-L sample is whole inside the tile, so masking l==0 / l==L-1
    # reproduces padding=1 and removes any cross-sample bleed from the roll.
    left = jnp.where(pos == 0, 0.0, pltpu.roll(x2, 1, axis=0))              # x[l-1]
    right = jnp.where(pos == L - 1, 0.0, pltpu.roll(x2, rows - 1, axis=0))  # x[l+1]
    # f32 MXU operands (explicit accuracy decision): kernel is HBM-bound, the
    # extra MXU passes are free, and the BN statistics stay un-quantized.
    y = (jnp.dot(left, w_ref[0], preferred_element_type=jnp.float32)
         + jnp.dot(x2, w_ref[1], preferred_element_type=jnp.float32)
         + jnp.dot(right, w_ref[2], preferred_element_type=jnp.float32))   # (rows, Cout)
    # Conv bias intentionally omitted: training-mode BN subtracts the batch
    # mean, so the bias cancels exactly.

    # ---- phase 0: one-pass batch statistics (sum and sum of squares). ----
    @pl.when((phase == 0) & (tile == 0))
    def _init():
        sum_ref[...] = jnp.zeros_like(sum_ref)
        sq_ref[...] = jnp.zeros_like(sq_ref)

    @pl.when(phase == 0)
    def _accumulate():
        sum_ref[...] += jnp.sum(y, axis=0, keepdims=True)
        sq_ref[...] += jnp.sum(y * y, axis=0, keepdims=True)

    @pl.when((phase == 0) & (tile == n_tiles - 1))
    def _finalize_stats():
        inv_n = jnp.float32(1.0 / n_rows_total)
        mean = sum_ref[...] * inv_n
        # clamp: E[y^2] - E[y]^2 can go slightly negative in f32.
        var = jnp.maximum(sq_ref[...] * inv_n - mean * mean, 0.0)
        scale = g_ref[...] * lax.rsqrt(var + BN_EPS)     # BN affine folded
        scale_ref[...] = scale
        shift_ref[...] = beta_ref[...] - mean * scale

    # ---- phase 1: normalize + ReLU, write the output block. ----
    @pl.when(phase == 1)
    def _normalize():
        out = jnp.maximum(y * scale_ref[...] + shift_ref[...], 0.0)
        o_ref[...] = out.reshape(btile, L, cout)


# ------------------------- VMEM budget / tile sizing ------------------------
def _vmem_capacity_bytes():
    try:
        info = pltpu.get_tpu_info()
        cap = getattr(info, "vmem_capacity_bytes", None)
        if cap:
            return int(cap)
    except Exception:
        pass
    return 128 << 20        # v5e/v6e default when the query is unavailable


def _vmem_budget_bytes():
    cap = _vmem_capacity_bytes()
    if cap <= (64 << 20):   # v7x: leave headroom for compiler scratch/pipelining
        return 52 << 20
    return 104 << 20        # v5e / v6e: use most of the 128 MiB physical VMEM


def _tile_bytes(btile, L, cin, cout):
    """Rough per-call VMEM footprint for one (btile, L) tile."""
    rows = btile * L
    io = 2 * rows * cin * 4 + 2 * rows * cout * 4          # double-buffered x / o
    work = 4 * rows * (3 * cin + cout)                     # left/center/right + y (f32)
    fixed = 2 * (3 * cin * cout + 2 * cout) * 4 + 4 * cout * 4
    return int(1.5 * (io + work)) + fixed                  # margin for relayouts


def _auto_btile(B, L, cin, cout, budget, max_rows=8192):
    """Largest divisor of B whose tile fits the VMEM budget (<= ~8192 rows)."""
    best = 1
    for d in range(1, B + 1):
        if B % d != 0:
            continue
        if d > 1 and (d * L > max_rows or _tile_bytes(d, L, cin, cout) > budget):
            continue
        best = d
    return best


# ------------------------------- wrappers -----------------------------------
def _conv_bn_relu(x_blc, w_kio, gamma, beta, *, btile=None):
    """One Conv1d + BatchNorm1d(train) + ReLU layer as a single tiled call."""
    B, L, cin = x_blc.shape
    cout = w_kio.shape[-1]
    budget = _vmem_budget_bytes()
    if btile is None:
        btile = _auto_btile(B, L, cin, cout, budget)
    assert B % btile == 0, (B, btile)
    n_tiles = B // btile

    kernel = functools.partial(_layer_kernel, n_rows_total=B * L)

    return pl.pallas_call(
        kernel,
        out_shape=jax.ShapeDtypeStruct((B, L, cout), jnp.float32),
        grid=(2, n_tiles),                                # (phase, batch tile)
        in_specs=[
            pl.BlockSpec((btile, L, cin), lambda p, t: (t, 0, 0)),
            pl.BlockSpec((3, cin, cout), lambda p, t: (0, 0, 0)),
            pl.BlockSpec((1, cout), lambda p, t: (0, 0)),
            pl.BlockSpec((1, cout), lambda p, t: (0, 0)),
        ],
        # Phase 0 never writes the output: pin the block index at 0 during the
        # stats pass so Pallas never flushes stale output tiles to HBM; during
        # phase 1 it advances with the tile index as usual.
        out_specs=pl.BlockSpec((btile, L, cout), lambda p, t: (p * t, 0, 0)),
        scratch_shapes=[pltpu.VMEM((1, cout), jnp.float32) for _ in range(4)],
        compiler_params=pltpu.CompilerParams(
            # Both axes carry state (BN accumulators / revisited output block)
            # so they stay sequential. TODO(synk): v7x core_parallel split of
            # the tile axis with a cross-core stat combine is not done here.
            dimension_semantics=("arbitrary", "arbitrary"),
            vmem_limit_bytes=budget,
        ),
    )(x_blc, w_kio, gamma, beta)


def encoder_forward_blc(x_blc, kparams, btile=None):
    """Hot-path entry point: channels-last (B, L, C_in) -> (B, L, 4H)."""
    # TODO(synk): fusing layer i's normalize with layer i+1's stats pass would
    # remove an HBM round trip of each intermediate activation.
    h = _conv_bn_relu(x_blc, kparams['w1'], kparams['g1'], kparams['be1'], btile=btile)
    h = _conv_bn_relu(h, kparams['w2'], kparams['g2'], kparams['be2'], btile=btile)
    h = _conv_bn_relu(h, kparams['w3'], kparams['g3'], kparams['be3'], btile=btile)
    return h


@functools.partial(jax.jit, static_argnames=("btile",))
def encoder_forward(x_ncl, kparams, btile=None):
    """PyTorch-interface wrapper: NCL (B, C_in, L) -> NCL (B, 4H, L)."""
    x_blc = jnp.transpose(x_ncl, (0, 2, 1))
    out_blc = encoder_forward_blc(x_blc, kparams, btile=btile)
    return jnp.transpose(out_blc, (0, 2, 1))


# ---------------- pure-JAX reference (PyTorch NCL semantics) ----------------
def reference_forward(x_ncl, tparams):
    def layer(x, w, b, g, beta):
        y = jax.lax.conv_general_dilated(
            x, w, window_strides=(1,), padding=[(1, 1)],
            dimension_numbers=('NCH', 'OIH', 'NCH'))
        y = y + b[None, :, None]
        mean = jnp.mean(y, axis=(0, 2), keepdims=True)
        var = jnp.mean((y - mean) ** 2, axis=(0, 2), keepdims=True)
        y = (y - mean) / jnp.sqrt(var + BN_EPS)
        y = y * g[None, :, None] + beta[None, :, None]
        return jnp.maximum(y, 0.0)

    h = layer(x_ncl, tparams['w1'], tparams['b1'], tparams['g1'], tparams['be1'])
    h = layer(h, tparams['w2'], tparams['b2'], tparams['g2'], tparams['be2'])
    h = layer(h, tparams['w3'], tparams['b3'], tparams['g3'], tparams['be3'])
    return h


def init_params(key, c_in, hidden):
    """Deterministic synthetic parameters (torch layout + kernel layout)."""
    dims = [(c_in, hidden), (hidden, 2 * hidden), (2 * hidden, 4 * hidden)]
    tparams, kparams = {}, {}
    for i, (ci, co) in enumerate(dims, start=1):
        key, kw, kb, kg, kbe = jax.random.split(key, 5)
        w = 0.1 * jax.random.normal(kw, (co, ci, 3), jnp.float32)    # torch (O, I, K)
        b = 0.1 * jax.random.normal(kb, (co,), jnp.float32)
        g = 1.0 + 0.1 * jax.random.normal(kg, (co,), jnp.float32)    # BN weight
        be = 0.1 * jax.random.normal(kbe, (co,), jnp.float32)        # BN bias
        tparams.update({f'w{i}': w, f'b{i}': b, f'g{i}': g, f'be{i}': be})
        # Kernel weight (3, Cin, Cout) f32; tap k pairs with x[l + k - 1].
        kparams[f'w{i}'] = jnp.transpose(w, (2, 1, 0))
        kparams[f'g{i}'] = g[None, :]
        kparams[f'be{i}'] = be[None, :]
        # conv bias deliberately not passed to the kernel (cancelled by BN mean).
    return tparams, kparams


if __name__ == "__main__":
    B, C_IN, L, HIDDEN = 2, 4, 16, 32

    key = jax.random.PRNGKey(0)
    key, kx = jax.random.split(key)
    x = jax.random.normal(kx, (B, C_IN, L), jnp.float32)             # NCL like PyTorch

    tparams, kparams = init_params(key, C_IN, HIDDEN)

    ref = jax.block_until_ready(reference_forward(x, tparams))

    # Default path: VMEM-budget-driven tiles (whole batch in one tile here).
    out = jax.block_until_ready(encoder_forward(x, kparams))
    # btile=1 -> 2 batch tiles: exercises cross-tile BN-stat accumulation and
    # the pinned-then-advancing output-block path.
    out_tiled = jax.block_until_ready(encoder_forward(x, kparams, btile=1))

    assert out.shape == (B, 4 * HIDDEN, L), out.shape
    assert out_tiled.shape == (B, 4 * HIDDEN, L), out_tiled.shape

    for got in (out, out_tiled):
        err = float(np.max(np.abs(np.asarray(got) - np.asarray(ref))))
        assert np.allclose(np.asarray(got), np.asarray(ref), rtol=1e-2, atol=1e-2), (
            "max abs diff = %g" % err)

    print("KERNEL_OK")
</pallas_src>

<mosaic_0001>
module attributes {stable_mosaic.version = 11 : i64} {
  func.func @_layer_kernel(%arg0: i32, %arg1: i32, %arg2: memref<2x16x32xf32, #tpu.memory_space<vmem>>, %arg3: memref<3x32x64xf32, #tpu.memory_space<vmem>>, %arg4: memref<1x64xf32, #tpu.memory_space<vmem>>, %arg5: memref<1x64xf32, #tpu.memory_space<vmem>>, %arg6: memref<2x16x64xf32, #tpu.memory_space<vmem>>, %arg7: memref<1x64xf32, #tpu.memory_space<vmem>>, %arg8: memref<1x64xf32, #tpu.memory_space<vmem>>, %arg9: memref<1x64xf32, #tpu.memory_space<vmem>>, %arg10: memref<1x64xf32, #tpu.memory_space<vmem>>) attributes {dimension_semantics = [#tpu.dimension_semantics<arbitrary>, #tpu.dimension_semantics<arbitrary>], iteration_bounds = array<i64: 2, 1>, scalar_prefetch = 0 : i64, scratch_operands = 4 : i64, tpu.core_type = #tpu.core_type<tc>, window_params = [{transform_indices = @transform_0, window_bounds = array<i64: 2, 16, 32>}, {pipeline_mode = #tpu.pipeline_mode<synchronous>, transform_indices = @transform_1, window_bounds = array<i64: 3, 32, 64>}, {pipeline_mode = #tpu.pipeline_mode<synchronous>, transform_indices = @transform_2, window_bounds = array<i64: 1, 64>}, {pipeline_mode = #tpu.pipeline_mode<synchronous>, transform_indices = @transform_3, window_bounds = array<i64: 1, 64>}, {transform_indices = @transform_4, window_bounds = array<i64: 2, 16, 64>}]} {
    %c0 = arith.constant 0 : index
    %c0_0 = arith.constant 0 : index
    %c0_1 = arith.constant 0 : index
    %0 = vector.load %arg2[%c0, %c0_0, %c0_1] : memref<2x16x32xf32, #tpu.memory_space<vmem>>, vector<2x16x32xf32>
    %1 = vector.shape_cast %0 : vector<2x16x32xf32> to vector<32x32xf32>
    %2 = tpu.iota {dimensions = array<i32: 1>} : vector<2x16x1xi32>
    %3 = vector.shape_cast %2 : vector<2x16x1xi32> to vector<32x1xi32>
    %c0_i32 = arith.constant 0 : i32
    %4 = vector.broadcast %c0_i32 : i32 to vector<32x1xi32>
    %5 = arith.cmpi eq, %3, %4 : vector<32x1xi32>
    %c1_i32 = arith.constant 1 : i32
    %6 = tpu.dynamic_rotate %1 by %c1_i32 dim 0 : vector<32x32xf32>, i32 -> vector<32x32xf32>
    %cst = arith.constant 0.000000e+00 : f32
    %7 = vector.shape_cast %5 : vector<32x1xi1> to vector<32x1xi1>
    %8 = vector.broadcast %7 : vector<32x1xi1> to vector<32x32xi1>
    %9 = vector.broadcast %cst : f32 to vector<32x32xf32>
    %10 = arith.select %8, %9, %6 : vector<32x32xi1>, vector<32x32xf32>
    %c15_i32 = arith.constant 15 : i32
    %11 = vector.broadcast %c15_i32 : i32 to vector<32x1xi32>
    %12 = arith.cmpi eq, %3, %11 : vector<32x1xi32>
    %c31_i32 = arith.constant 31 : i32
    %13 = tpu.dynamic_rotate %1 by %c31_i32 dim 0 : vector<32x32xf32>, i32 -> vector<32x32xf32>
    %cst_2 = arith.constant 0.000000e+00 : f32
    %14 = vector.shape_cast %12 : vector<32x1xi1> to vector<32x1xi1>
    %15 = vector.broadcast %14 : vector<32x1xi1> to vector<32x32xi1>
    %16 = vector.broadcast %cst_2 : f32 to vector<32x32xf32>
    %17 = arith.select %15, %16, %13 : vector<32x32xi1>, vector<32x32xf32>
    %c0_3 = arith.constant 0 : index
    %c0_4 = arith.constant 0 : index
    %c0_5 = arith.constant 0 : index
    %18 = vector.load %arg3[%c0_3, %c0_4, %c0_5] : memref<3x32x64xf32, #tpu.memory_space<vmem>>, vector<1x32x64xf32>
    %19 = vector.shape_cast %18 : vector<1x32x64xf32> to vector<32x64xf32>
    %cst_6 = arith.constant dense<0.000000e+00> : vector<32x64xf32>
    %20 = tpu.matmul %10, %19, %cst_6 {dimension_numbers = #tpu.dot_dimension_numbers<[1], [0], [0], [1], [0, 0, 1, 1], [], []>} : vector<32x32xf32>, vector<32x64xf32>, vector<32x64xf32> -> vector<32x64xf32>
    %c1 = arith.constant 1 : index
    %c0_7 = arith.constant 0 : index
    %c0_8 = arith.constant 0 : index
    %21 = vector.load %arg3[%c1, %c0_7, %c0_8] : memref<3x32x64xf32, #tpu.memory_space<vmem>>, vector<1x32x64xf32>
    %22 = vector.shape_cast %21 : vector<1x32x64xf32> to vector<32x64xf32>
    %cst_9 = arith.constant dense<0.000000e+00> : vector<32x64xf32>
    %23 = tpu.matmul %1, %22, %cst_9 {dimension_numbers = #tpu.dot_dimension_numbers<[1], [0], [0], [1], [0, 0, 1, 1], [], []>} : vector<32x32xf32>, vector<32x64xf32>, vector<32x64xf32> -> vector<32x64xf32>
    %24 = arith.addf %20, %23 : vector<32x64xf32>
    %c2 = arith.constant 2 : index
    %c0_10 = arith.constant 0 : index
    %c0_11 = arith.constant 0 : index
    %25 = vector.load %arg3[%c2, %c0_10, %c0_11] : memref<3x32x64xf32, #tpu.memory_space<vmem>>, vector<1x32x64xf32>
    %26 = vector.shape_cast %25 : vector<1x32x64xf32> to vector<32x64xf32>
    %cst_12 = arith.constant dense<0.000000e+00> : vector<32x64xf32>
    %27 = tpu.matmul %17, %26, %cst_12 {dimension_numbers = #tpu.dot_dimension_numbers<[1], [0], [0], [1], [0, 0, 1, 1], [], []>} : vector<32x32xf32>, vector<32x64xf32>, vector<32x64xf32> -> vector<32x64xf32>
    %28 = arith.addf %24, %27 : vector<32x64xf32>
    %c0_i32_13 = arith.constant 0 : i32
    %29 = arith.cmpi eq, %arg0, %c0_i32_13 : i32
    %c0_i32_14 = arith.constant 0 : i32
    %30 = arith.cmpi eq, %arg1, %c0_i32_14 : i32
    %31 = arith.andi %29, %30 : i1
    %32 = arith.extui %31 : i1 to i32
    %c0_i32_15 = arith.constant 0 : i32
    %33 = arith.cmpi ne, %32, %c0_i32_15 : i32
    scf.if %33 {
      %cst_23 = arith.constant 0.000000e+00 : f32
      %45 = vector.broadcast %cst_23 : f32 to vector<1x64xf32>
      %c0_24 = arith.constant 0 : index
      %c0_25 = arith.constant 0 : index
      %46 = vector.load %arg7[%c0_24, %c0_25] : memref<1x64xf32, #tpu.memory_space<vmem>>, vector<1x64xf32>
      tpu.vector_store %arg7[%c0_24, %c0_25], %45 {strides = array<i32>} : memref<1x64xf32, #tpu.memory_space<vmem>>, vector<1x64xf32>,
      %cst_26 = arith.constant 0.000000e+00 : f32
      %47 = vector.broadcast %cst_26 : f32 to vector<1x64xf32>
      %c0_27 = arith.constant 0 : index
      %c0_28 = arith.constant 0 : index
      %48 = vector.load %arg8[%c0_27, %c0_28] : memref<1x64xf32, #tpu.memory_space<vmem>>, vector<1x64xf32>
      tpu.vector_store %arg8[%c0_27, %c0_28], %47 {strides = array<i32>} : memref<1x64xf32, #tpu.memory_space<vmem>>, vector<1x64xf32>,
    } else {
    }
    %c0_i32_16 = arith.constant 0 : i32
    %34 = arith.cmpi eq, %arg0, %c0_i32_16 : i32
    %35 = arith.extui %34 : i1 to i32
    %c0_i32_17 = arith.constant 0 : i32
    %36 = arith.cmpi ne, %35, %c0_i32_17 : i32
    scf.if %36 {
      %c0_23 = arith.constant 0 : index
      %c0_24 = arith.constant 0 : index
      %45 = vector.load %arg7[%c0_23, %c0_24] : memref<1x64xf32, #tpu.memory_space<vmem>>, vector<1x64xf32>
      %cst_25 = arith.constant dense<0.000000e+00> : vector<64xf32>
      %46 = vector.multi_reduction <add>, %28, %cst_25 [0] : vector<32x64xf32> to vector<64xf32>
      %47 = vector.shape_cast %46 : vector<64xf32> to vector<1x64xf32>
      %48 = arith.addf %45, %47 : vector<1x64xf32>
      %c0_26 = arith.constant 0 : index
      %c0_27 = arith.constant 0 : index
      %49 = vector.load %arg7[%c0_26, %c0_27] : memref<1x64xf32, #tpu.memory_space<vmem>>, vector<1x64xf32>
      tpu.vector_store %arg7[%c0_26, %c0_27], %48 {strides = array<i32>} : memref<1x64xf32, #tpu.memory_space<vmem>>, vector<1x64xf32>,
      %c0_28 = arith.constant 0 : index
      %c0_29 = arith.constant 0 : index
      %50 = vector.load %arg8[%c0_28, %c0_29] : memref<1x64xf32, #tpu.memory_space<vmem>>, vector<1x64xf32>
      %51 = arith.mulf %28, %28 : vector<32x64xf32>
      %cst_30 = arith.constant dense<0.000000e+00> : vector<64xf32>
      %52 = vector.multi_reduction <add>, %51, %cst_30 [0] : vector<32x64xf32> to vector<64xf32>
      %53 = vector.shape_cast %52 : vector<64xf32> to vector<1x64xf32>
      %54 = arith.addf %50, %53 : vector<1x64xf32>
      %c0_31 = arith.constant 0 : index
      %c0_32 = arith.constant 0 : index
      %55 = vector.load %arg8[%c0_31, %c0_32] : memref<1x64xf32, #tpu.memory_space<vmem>>, vector<1x64xf32>
      tpu.vector_store %arg8[%c0_31, %c0_32], %54 {strides = array<i32>} : memref<1x64xf32, #tpu.memory_space<vmem>>, vector<1x64xf32>,
    } else {
    }
    %c0_i32_18 = arith.constant 0 : i32
    %37 = arith.cmpi eq, %arg0, %c0_i32_18 : i32
    %c0_i32_19 = arith.constant 0 : i32
    %38 = arith.cmpi eq, %arg1, %c0_i32_19 : i32
    %39 = arith.andi %37, %38 : i1
    %40 = arith.extui %39 : i1 to i32
    %c0_i32_20 = arith.constant 0 : i32
    %41 = arith.cmpi ne, %40, %c0_i32_20 : i32
    scf.if %41 {
      %c0_23 = arith.constant 0 : index
      %c0_24 = arith.constant 0 : index
      %45 = vector.load %arg7[%c0_23, %c0_24] : memref<1x64xf32, #tpu.memory_space<vmem>>, vector<1x64xf32>
      %cst_25 = arith.constant 3.125000e-02 : f32
      %46 = vector.broadcast %cst_25 : f32 to vector<1x64xf32>
      %47 = arith.mulf %45, %46 : vector<1x64xf32>
      %c0_26 = arith.constant 0 : index
      %c0_27 = arith.constant 0 : index
      %48 = vector.load %arg8[%c0_26, %c0_27] : memref<1x64xf32, #tpu.memory_space<vmem>>, vector<1x64xf32>
      %cst_28 = arith.constant 3.125000e-02 : f32
      %49 = vector.broadcast %cst_28 : f32 to vector<1x64xf32>
      %50 = arith.mulf %48, %49 : vector<1x64xf32>
      %51 = arith.mulf %47, %47 : vector<1x64xf32>
      %52 = arith.subf %50, %51 : vector<1x64xf32>
      %cst_29 = arith.constant 0.000000e+00 : f32
      %53 = vector.broadcast %cst_29 : f32 to vector<1x64xf32>
      %54 = arith.maximumf %52, %53 : vector<1x64xf32>
      %c0_30 = arith.constant 0 : index
      %c0_31 = arith.constant 0 : index
      %55 = vector.load %arg4[%c0_30, %c0_31] : memref<1x64xf32, #tpu.memory_space<vmem>>, vector<1x64xf32>
      %cst_32 = arith.constant 9.99999974E-6 : f32
      %56 = vector.broadcast %cst_32 : f32 to vector<1x64xf32>
      %57 = arith.addf %54, %56 : vector<1x64xf32>
      %58 = math.rsqrt %57 : vector<1x64xf32>
      %59 = arith.mulf %55, %58 : vector<1x64xf32>
      %c0_33 = arith.constant 0 : index
      %c0_34 = arith.constant 0 : index
      %60 = vector.load %arg9[%c0_33, %c0_34] : memref<1x64xf32, #tpu.memory_space<vmem>>, vector<1x64xf32>
      tpu.vector_store %arg9[%c0_33, %c0_34], %59 {strides = array<i32>} : memref<1x64xf32, #tpu.memory_space<vmem>>, vector<1x64xf32>,
      %c0_35 = arith.constant 0 : index
      %c0_36 = arith.constant 0 : index
      %61 = vector.load %arg5[%c0_35, %c0_36] : memref<1x64xf32, #tpu.memory_space<vmem>>, vector<1x64xf32>
      %62 = arith.mulf %47, %59 : vector<1x64xf32>
      %63 = arith.subf %61, %62 : vector<1x64xf32>
      %c0_37 = arith.constant 0 : index
      %c0_38 = arith.constant 0 : index
      %64 = vector.load %arg10[%c0_37, %c0_38] : memref<1x64xf32, #tpu.memory_space<vmem>>, vector<1x64xf32>
      tpu.vector_store %arg10[%c0_37, %c0_38], %63 {strides = array<i32>} : memref<1x64xf32, #tpu.memory_space<vmem>>, vector<1x64xf32>,
    } else {
    }
    %c1_i32_21 = arith.constant 1 : i32
    %42 = arith.cmpi eq, %arg0, %c1_i32_21 : i32
    %43 = arith.extui %42 : i1 to i32
    %c0_i32_22 = arith.constant 0 : i32
    %44 = arith.cmpi ne, %43, %c0_i32_22 : i32
    scf.if %44 {
      %c0_23 = arith.constant 0 : index
      %c0_24 = arith.constant 0 : index
      %45 = vector.load %arg9[%c0_23, %c0_24] : memref<1x64xf32, #tpu.memory_space<vmem>>, vector<1x64xf32>
      %46 = vector.broadcast %45 : vector<1x64xf32> to vector<32x64xf32>
      %47 = arith.mulf %28, %46 : vector<32x64xf32>
      %c0_25 = arith.constant 0 : index
      %c0_26 = arith.constant 0 : index
      %48 = vector.load %arg10[%c0_25, %c0_26] : memref<1x64xf32, #tpu.memory_space<vmem>>, vector<1x64xf32>
      %49 = vector.broadcast %48 : vector<1x64xf32> to vector<32x64xf32>
      %50 = arith.addf %47, %49 : vector<32x64xf32>
      %cst_27 = arith.constant 0.000000e+00 : f32
      %51 = vector.broadcast %cst_27 : f32 to vector<32x64xf32>
      %52 = arith.maximumf %50, %51 : vector<32x64xf32>
      %53 = vector.shape_cast %52 : vector<32x64xf32> to vector<2x16x64xf32>
      %c0_28 = arith.constant 0 : index
      %c0_29 = arith.constant 0 : index
      %c0_30 = arith.constant 0 : index
      %54 = vector.load %arg6[%c0_28, %c0_29, %c0_30] : memref<2x16x64xf32, #tpu.memory_space<vmem>>, vector<2x16x64xf32>
      tpu.vector_store %arg6[%c0_28, %c0_29, %c0_30], %53 {strides = array<i32>} : memref<2x16x64xf32, #tpu.memory_space<vmem>>, vector<2x16x64xf32>,
    } else {
    }
    return
  }
  func.func @transform_0(%arg0: i32, %arg1: i32) -> (i32, i32, i32) {
    %c0_i32 = arith.constant 0 : i32
    %c0_i32_0 = arith.constant 0 : i32
    %c0_i32_1 = arith.constant 0 : i32
    return %arg1, %c0_i32, %c0_i32_0 : i32, i32, i32
  }
  func.func @transform_1(%arg0: i32, %arg1: i32) -> (i32, i32, i32) {
    %c0_i32 = arith.constant 0 : i32
    %c0_i32_0 = arith.constant 0 : i32
    %c0_i32_1 = arith.constant 0 : i32
    %c0_i32_2 = arith.constant 0 : i32
    return %c0_i32, %c0_i32_0, %c0_i32_1 : i32, i32, i32
  }
  func.func @transform_2(%arg0: i32, %arg1: i32) -> (i32, i32) {
    %c0_i32 = arith.constant 0 : i32
    %c0_i32_0 = arith.constant 0 : i32
    %c0_i32_1 = arith.constant 0 : i32
    return %c0_i32, %c0_i32_0 : i32, i32
  }
  func.func @transform_3(%arg0: i32, %arg1: i32) -> (i32, i32) {
    %c0_i32 = arith.constant 0 : i32
    %c0_i32_0 = arith.constant 0 : i32
    %c0_i32_1 = arith.constant 0 : i32
    return %c0_i32, %c0_i32_0 : i32, i32
  }
  func.func @transform_4(%arg0: i32, %arg1: i32) -> (i32, i32, i32) {
    %0 = arith.muli %arg0, %arg1 : i32
    %c0_i32 = arith.constant 0 : i32
    %c0_i32_0 = arith.constant 0 : i32
    %c0_i32_1 = arith.constant 0 : i32
    return %0, %c0_i32, %c0_i32_0 : i32, i32, i32
  }
}

module attributes {stable_mosaic.version = 11 : i64} {
  func.func @_layer_kernel(%arg0: i32, %arg1: i32, %arg2: memref<2x16x64xf32, #tpu.memory_space<vmem>>, %arg3: memref<3x64x128xf32, #tpu.memory_space<vmem>>, %arg4: memref<1x128xf32, #tpu.memory_space<vmem>>, %arg5: memref<1x128xf32, #tpu.memory_space<vmem>>, %arg6: memref<2x16x128xf32, #tpu.memory_space<vmem>>, %arg7: memref<1x128xf32, #tpu.memory_space<vmem>>, %arg8: memref<1x128xf32, #tpu.memory_space<vmem>>, %arg9: memref<1x128xf32, #tpu.memory_space<vmem>>, %arg10: memref<1x128xf32, #tpu.memory_space<vmem>>) attributes {dimension_semantics = [#tpu.dimension_semantics<arbitrary>, #tpu.dimension_semantics<arbitrary>], iteration_bounds = array<i64: 2, 1>, scalar_prefetch = 0 : i64, scratch_operands = 4 : i64, tpu.core_type = #tpu.core_type<tc>, window_params = [{transform_indices = @transform_0, window_bounds = array<i64: 2, 16, 64>}, {pipeline_mode = #tpu.pipeline_mode<synchronous>, transform_indices = @transform_1, window_bounds = array<i64: 3, 64, 128>}, {pipeline_mode = #tpu.pipeline_mode<synchronous>, transform_indices = @transform_2, window_bounds = array<i64: 1, 128>}, {pipeline_mode = #tpu.pipeline_mode<synchronous>, transform_indices = @transform_3, window_bounds = array<i64: 1, 128>}, {transform_indices = @transform_4, window_bounds = array<i64: 2, 16, 128>}]} {
    %c0 = arith.constant 0 : index
    %c0_0 = arith.constant 0 : index
    %c0_1 = arith.constant 0 : index
    %0 = vector.load %arg2[%c0, %c0_0, %c0_1] : memref<2x16x64xf32, #tpu.memory_space<vmem>>, vector<2x16x64xf32>
    %1 = vector.shape_cast %0 : vector<2x16x64xf32> to vector<32x64xf32>
    %2 = tpu.iota {dimensions = array<i32: 1>} : vector<2x16x1xi32>
    %3 = vector.shape_cast %2 : vector<2x16x1xi32> to vector<32x1xi32>
    %c0_i32 = arith.constant 0 : i32
    %4 = vector.broadcast %c0_i32 : i32 to vector<32x1xi32>
    %5 = arith.cmpi eq, %3, %4 : vector<32x1xi32>
    %c1_i32 = arith.constant 1 : i32
    %6 = tpu.dynamic_rotate %1 by %c1_i32 dim 0 : vector<32x64xf32>, i32 -> vector<32x64xf32>
    %cst = arith.constant 0.000000e+00 : f32
    %7 = vector.shape_cast %5 : vector<32x1xi1> to vector<32x1xi1>
    %8 = vector.broadcast %7 : vector<32x1xi1> to vector<32x64xi1>
    %9 = vector.broadcast %cst : f32 to vector<32x64xf32>
    %10 = arith.select %8, %9, %6 : vector<32x64xi1>, vector<32x64xf32>
    %c15_i32 = arith.constant 15 : i32
    %11 = vector.broadcast %c15_i32 : i32 to vector<32x1xi32>
    %12 = arith.cmpi eq, %3, %11 : vector<32x1xi32>
    %c31_i32 = arith.constant 31 : i32
    %13 = tpu.dynamic_rotate %1 by %c31_i32 dim 0 : vector<32x64xf32>, i32 -> vector<32x64xf32>
    %cst_2 = arith.constant 0.000000e+00 : f32
    %14 = vector.shape_cast %12 : vector<32x1xi1> to vector<32x1xi1>
    %15 = vector.broadcast %14 : vector<32x1xi1> to vector<32x64xi1>
    %16 = vector.broadcast %cst_2 : f32 to vector<32x64xf32>
    %17 = arith.select %15, %16, %13 : vector<32x64xi1>, vector<32x64xf32>
    %c0_3 = arith.constant 0 : index
    %c0_4 = arith.constant 0 : index
    %c0_5 = arith.constant 0 : index
    %18 = vector.load %arg3[%c0_3, %c0_4, %c0_5] : memref<3x64x128xf32, #tpu.memory_space<vmem>>, vector<1x64x128xf32>
    %19 = vector.shape_cast %18 : vector<1x64x128xf32> to vector<64x128xf32>
    %cst_6 = arith.constant dense<0.000000e+00> : vector<32x128xf32>
    %20 = tpu.matmul %10, %19, %cst_6 {dimension_numbers = #tpu.dot_dimension_numbers<[1], [0], [0], [1], [0, 0, 1, 1], [], []>} : vector<32x64xf32>, vector<64x128xf32>, vector<32x128xf32> -> vector<32x128xf32>
    %c1 = arith.constant 1 : index
    %c0_7 = arith.constant 0 : index
    %c0_8 = arith.constant 0 : index
    %21 = vector.load %arg3[%c1, %c0_7, %c0_8] : memref<3x64x128xf32, #tpu.memory_space<vmem>>, vector<1x64x128xf32>
    %22 = vector.shape_cast %21 : vector<1x64x128xf32> to vector<64x128xf32>
    %cst_9 = arith.constant dense<0.000000e+00> : vector<32x128xf32>
    %23 = tpu.matmul %1, %22, %cst_9 {dimension_numbers = #tpu.dot_dimension_numbers<[1], [0], [0], [1], [0, 0, 1, 1], [], []>} : vector<32x64xf32>, vector<64x128xf32>, vector<32x128xf32> -> vector<32x128xf32>
    %24 = arith.addf %20, %23 : vector<32x128xf32>
    %c2 = arith.constant 2 : index
    %c0_10 = arith.constant 0 : index
    %c0_11 = arith.constant 0 : index
    %25 = vector.load %arg3[%c2, %c0_10, %c0_11] : memref<3x64x128xf32, #tpu.memory_space<vmem>>, vector<1x64x128xf32>
    %26 = vector.shape_cast %25 : vector<1x64x128xf32> to vector<64x128xf32>
    %cst_12 = arith.constant dense<0.000000e+00> : vector<32x128xf32>
    %27 = tpu.matmul %17, %26, %cst_12 {dimension_numbers = #tpu.dot_dimension_numbers<[1], [0], [0], [1], [0, 0, 1, 1], [], []>} : vector<32x64xf32>, vector<64x128xf32>, vector<32x128xf32> -> vector<32x128xf32>
    %28 = arith.addf %24, %27 : vector<32x128xf32>
    %c0_i32_13 = arith.constant 0 : i32
    %29 = arith.cmpi eq, %arg0, %c0_i32_13 : i32
    %c0_i32_14 = arith.constant 0 : i32
    %30 = arith.cmpi eq, %arg1, %c0_i32_14 : i32
    %31 = arith.andi %29, %30 : i1
    %32 = arith.extui %31 : i1 to i32
    %c0_i32_15 = arith.constant 0 : i32
    %33 = arith.cmpi ne, %32, %c0_i32_15 : i32
    scf.if %33 {
      %cst_23 = arith.constant 0.000000e+00 : f32
      %45 = vector.broadcast %cst_23 : f32 to vector<1x128xf32>
      %c0_24 = arith.constant 0 : index
      %c0_25 = arith.constant 0 : index
      %46 = vector.load %arg7[%c0_24, %c0_25] : memref<1x128xf32, #tpu.memory_space<vmem>>, vector<1x128xf32>
      tpu.vector_store %arg7[%c0_24, %c0_25], %45 {strides = array<i32>} : memref<1x128xf32, #tpu.memory_space<vmem>>, vector<1x128xf32>,
      %cst_26 = arith.constant 0.000000e+00 : f32
      %47 = vector.broadcast %cst_26 : f32 to vector<1x128xf32>
      %c0_27 = arith.constant 0 : index
      %c0_28 = arith.constant 0 : index
      %48 = vector.load %arg8[%c0_27, %c0_28] : memref<1x128xf32, #tpu.memory_space<vmem>>, vector<1x128xf32>
      tpu.vector_store %arg8[%c0_27, %c0_28], %47 {strides = array<i32>} : memref<1x128xf32, #tpu.memory_space<vmem>>, vector<1x128xf32>,
    } else {
    }
    %c0_i32_16 = arith.constant 0 : i32
    %34 = arith.cmpi eq, %arg0, %c0_i32_16 : i32
    %35 = arith.extui %34 : i1 to i32
    %c0_i32_17 = arith.constant 0 : i32
    %36 = arith.cmpi ne, %35, %c0_i32_17 : i32
    scf.if %36 {
      %c0_23 = arith.constant 0 : index
      %c0_24 = arith.constant 0 : index
      %45 = vector.load %arg7[%c0_23, %c0_24] : memref<1x128xf32, #tpu.memory_space<vmem>>, vector<1x128xf32>
      %cst_25 = arith.constant dense<0.000000e+00> : vector<128xf32>
      %46 = vector.multi_reduction <add>, %28, %cst_25 [0] : vector<32x128xf32> to vector<128xf32>
      %47 = vector.shape_cast %46 : vector<128xf32> to vector<1x128xf32>
      %48 = arith.addf %45, %47 : vector<1x128xf32>
      %c0_26 = arith.constant 0 : index
      %c0_27 = arith.constant 0 : index
      %49 = vector.load %arg7[%c0_26, %c0_27] : memref<1x128xf32, #tpu.memory_space<vmem>>, vector<1x128xf32>
      tpu.vector_store %arg7[%c0_26, %c0_27], %48 {strides = array<i32>} : memref<1x128xf32, #tpu.memory_space<vmem>>, vector<1x128xf32>,
      %c0_28 = arith.constant 0 : index
      %c0_29 = arith.constant 0 : index
      %50 = vector.load %arg8[%c0_28, %c0_29] : memref<1x128xf32, #tpu.memory_space<vmem>>, vector<1x128xf32>
      %51 = arith.mulf %28, %28 : vector<32x128xf32>
      %cst_30 = arith.constant dense<0.000000e+00> : vector<128xf32>
      %52 = vector.multi_reduction <add>, %51, %cst_30 [0] : vector<32x128xf32> to vector<128xf32>
      %53 = vector.shape_cast %52 : vector<128xf32> to vector<1x128xf32>
      %54 = arith.addf %50, %53 : vector<1x128xf32>
      %c0_31 = arith.constant 0 : index
      %c0_32 = arith.constant 0 : index
      %55 = vector.load %arg8[%c0_31, %c0_32] : memref<1x128xf32, #tpu.memory_space<vmem>>, vector<1x128xf32>
      tpu.vector_store %arg8[%c0_31, %c0_32], %54 {strides = array<i32>} : memref<1x128xf32, #tpu.memory_space<vmem>>, vector<1x128xf32>,
    } else {
    }
    %c0_i32_18 = arith.constant 0 : i32
    %37 = arith.cmpi eq, %arg0, %c0_i32_18 : i32
    %c0_i32_19 = arith.constant 0 : i32
    %38 = arith.cmpi eq, %arg1, %c0_i32_19 : i32
    %39 = arith.andi %37, %38 : i1
    %40 = arith.extui %39 : i1 to i32
    %c0_i32_20 = arith.constant 0 : i32
    %41 = arith.cmpi ne, %40, %c0_i32_20 : i32
    scf.if %41 {
      %c0_23 = arith.constant 0 : index
      %c0_24 = arith.constant 0 : index
      %45 = vector.load %arg7[%c0_23, %c0_24] : memref<1x128xf32, #tpu.memory_space<vmem>>, vector<1x128xf32>
      %cst_25 = arith.constant 3.125000e-02 : f32
      %46 = vector.broadcast %cst_25 : f32 to vector<1x128xf32>
      %47 = arith.mulf %45, %46 : vector<1x128xf32>
      %c0_26 = arith.constant 0 : index
      %c0_27 = arith.constant 0 : index
      %48 = vector.load %arg8[%c0_26, %c0_27] : memref<1x128xf32, #tpu.memory_space<vmem>>, vector<1x128xf32>
      %cst_28 = arith.constant 3.125000e-02 : f32
      %49 = vector.broadcast %cst_28 : f32 to vector<1x128xf32>
      %50 = arith.mulf %48, %49 : vector<1x128xf32>
      %51 = arith.mulf %47, %47 : vector<1x128xf32>
      %52 = arith.subf %50, %51 : vector<1x128xf32>
      %cst_29 = arith.constant 0.000000e+00 : f32
      %53 = vector.broadcast %cst_29 : f32 to vector<1x128xf32>
      %54 = arith.maximumf %52, %53 : vector<1x128xf32>
      %c0_30 = arith.constant 0 : index
      %c0_31 = arith.constant 0 : index
      %55 = vector.load %arg4[%c0_30, %c0_31] : memref<1x128xf32, #tpu.memory_space<vmem>>, vector<1x128xf32>
      %cst_32 = arith.constant 9.99999974E-6 : f32
      %56 = vector.broadcast %cst_32 : f32 to vector<1x128xf32>
      %57 = arith.addf %54, %56 : vector<1x128xf32>
      %58 = math.rsqrt %57 : vector<1x128xf32>
      %59 = arith.mulf %55, %58 : vector<1x128xf32>
      %c0_33 = arith.constant 0 : index
      %c0_34 = arith.constant 0 : index
      %60 = vector.load %arg9[%c0_33, %c0_34] : memref<1x128xf32, #tpu.memory_space<vmem>>, vector<1x128xf32>
      tpu.vector_store %arg9[%c0_33, %c0_34], %59 {strides = array<i32>} : memref<1x128xf32, #tpu.memory_space<vmem>>, vector<1x128xf32>,
      %c0_35 = arith.constant 0 : index
      %c0_36 = arith.constant 0 : index
      %61 = vector.load %arg5[%c0_35, %c0_36] : memref<1x128xf32, #tpu.memory_space<vmem>>, vector<1x128xf32>
      %62 = arith.mulf %47, %59 : vector<1x128xf32>
      %63 = arith.subf %61, %62 : vector<1x128xf32>
      %c0_37 = arith.constant 0 : index
      %c0_38 = arith.constant 0 : index
      %64 = vector.load %arg10[%c0_37, %c0_38] : memref<1x128xf32, #tpu.memory_space<vmem>>, vector<1x128xf32>
      tpu.vector_store %arg10[%c0_37, %c0_38], %63 {strides = array<i32>} : memref<1x128xf32, #tpu.memory_space<vmem>>, vector<1x128xf32>,
    } else {
    }
    %c1_i32_21 = arith.constant 1 : i32
    %42 = arith.cmpi eq, %arg0, %c1_i32_21 : i32
    %43 = arith.extui %42 : i1 to i32
    %c0_i32_22 = arith.constant 0 : i32
    %44 = arith.cmpi ne, %43, %c0_i32_22 : i32
    scf.if %44 {
      %c0_23 = arith.constant 0 : index
      %c0_24 = arith.constant 0 : index
      %45 = vector.load %arg9[%c0_23, %c0_24] : memref<1x128xf32, #tpu.memory_space<vmem>>, vector<1x128xf32>
      %46 = vector.broadcast %45 : vector<1x128xf32> to vector<32x128xf32>
      %47 = arith.mulf %28, %46 : vector<32x128xf32>
      %c0_25 = arith.constant 0 : index
      %c0_26 = arith.constant 0 : index
      %48 = vector.load %arg10[%c0_25, %c0_26] : memref<1x128xf32, #tpu.memory_space<vmem>>, vector<1x128xf32>
      %49 = vector.broadcast %48 : vector<1x128xf32> to vector<32x128xf32>
      %50 = arith.addf %47, %49 : vector<32x128xf32>
      %cst_27 = arith.constant 0.000000e+00 : f32
      %51 = vector.broadcast %cst_27 : f32 to vector<32x128xf32>
      %52 = arith.maximumf %50, %51 : vector<32x128xf32>
      %53 = vector.shape_cast %52 : vector<32x128xf32> to vector<2x16x128xf32>
      %c0_28 = arith.constant 0 : index
      %c0_29 = arith.constant 0 : index
      %c0_30 = arith.constant 0 : index
      %54 = vector.load %arg6[%c0_28, %c0_29, %c0_30] : memref<2x16x128xf32, #tpu.memory_space<vmem>>, vector<2x16x128xf32>
      tpu.vector_store %arg6[%c0_28, %c0_29, %c0_30], %53 {strides = array<i32>} : memref<2x16x128xf32, #tpu.memory_space<vmem>>, vector<2x16x128xf32>,
    } else {
    }
    return
  }
  func.func @transform_0(%arg0: i32, %arg1: i32) -> (i32, i32, i32) {
    %c0_i32 = arith.constant 0 : i32
    %c0_i32_0 = arith.constant 0 : i32
    %c0_i32_1 = arith.constant 0 : i32
    return %arg1, %c0_i32, %c0_i32_0 : i32, i32, i32
  }
  func.func @transform_1(%arg0: i32, %arg1: i32) -> (i32, i32, i32) {
    %c0_i32 = arith.constant 0 : i32
    %c0_i32_0 = arith.constant 0 : i32
    %c0_i32_1 = arith.constant 0 : i32
    %c0_i32_2 = arith.constant 0 : i32
    return %c0_i32, %c0_i32_0, %c0_i32_1 : i32, i32, i32
  }
  func.func @transform_2(%arg0: i32, %arg1: i32) -> (i32, i32) {
    %c0_i32 = arith.constant 0 : i32
    %c0_i32_0 = arith.constant 0 : i32
    %c0_i32_1 = arith.constant 0 : i32
    return %c0_i32, %c0_i32_0 : i32, i32
  }
  func.func @transform_3(%arg0: i32, %arg1: i32) -> (i32, i32) {
    %c0_i32 = arith.constant 0 : i32
    %c0_i32_0 = arith.constant 0 : i32
    %c0_i32_1 = arith.constant 0 : i32
    return %c0_i32, %c0_i32_0 : i32, i32
  }
  func.func @transform_4(%arg0: i32, %arg1: i32) -> (i32, i32, i32) {
    %0 = arith.muli %arg0, %arg1 : i32
    %c0_i32 = arith.constant 0 : i32
    %c0_i32_0 = arith.constant 0 : i32
    %c0_i32_1 = arith.constant 0 : i32
    return %0, %c0_i32, %c0_i32_0 : i32, i32, i32
  }
}

module attributes {stable_mosaic.version = 11 : i64} {
  func.func @_layer_kernel(%arg0: i32, %arg1: i32, %arg2: memref<2x16x4xf32, #tpu.memory_space<vmem>>, %arg3: memref<3x4x32xf32, #tpu.memory_space<vmem>>, %arg4: memref<1x32xf32, #tpu.memory_space<vmem>>, %arg5: memref<1x32xf32, #tpu.memory_space<vmem>>, %arg6: memref<2x16x32xf32, #tpu.memory_space<vmem>>, %arg7: memref<1x32xf32, #tpu.memory_space<vmem>>, %arg8: memref<1x32xf32, #tpu.memory_space<vmem>>, %arg9: memref<1x32xf32, #tpu.memory_space<vmem>>, %arg10: memref<1x32xf32, #tpu.memory_space<vmem>>) attributes {dimension_semantics = [#tpu.dimension_semantics<arbitrary>, #tpu.dimension_semantics<arbitrary>], iteration_bounds = array<i64: 2, 1>, scalar_prefetch = 0 : i64, scratch_operands = 4 : i64, tpu.core_type = #tpu.core_type<tc>, window_params = [{transform_indices = @transform_0, window_bounds = array<i64: 2, 16, 4>}, {pipeline_mode = #tpu.pipeline_mode<synchronous>, transform_indices = @transform_1, window_bounds = array<i64: 3, 4, 32>}, {pipeline_mode = #tpu.pipeline_mode<synchronous>, transform_indices = @transform_2, window_bounds = array<i64: 1, 32>}, {pipeline_mode = #tpu.pipeline_mode<synchronous>, transform_indices = @transform_3, window_bounds = array<i64: 1, 32>}, {transform_indices = @transform_4, window_bounds = array<i64: 2, 16, 32>}]} {
    %c0 = arith.constant 0 : index
    %c0_0 = arith.constant 0 : index
    %c0_1 = arith.constant 0 : index
    %0 = vector.load %arg2[%c0, %c0_0, %c0_1] : memref<2x16x4xf32, #tpu.memory_space<vmem>>, vector<2x16x4xf32>
    %1 = vector.shape_cast %0 : vector<2x16x4xf32> to vector<32x4xf32>
    %2 = tpu.iota {dimensions = array<i32: 1>} : vector<2x16x1xi32>
    %3 = vector.shape_cast %2 : vector<2x16x1xi32> to vector<32x1xi32>
    %c0_i32 = arith.constant 0 : i32
    %4 = vector.broadcast %c0_i32 : i32 to vector<32x1xi32>
    %5 = arith.cmpi eq, %3, %4 : vector<32x1xi32>
    %c1_i32 = arith.constant 1 : i32
    %6 = tpu.dynamic_rotate %1 by %c1_i32 dim 0 : vector<32x4xf32>, i32 -> vector<32x4xf32>
    %cst = arith.constant 0.000000e+00 : f32
    %7 = vector.shape_cast %5 : vector<32x1xi1> to vector<32x1xi1>
    %8 = vector.broadcast %7 : vector<32x1xi1> to vector<32x4xi1>
    %9 = vector.broadcast %cst : f32 to vector<32x4xf32>
    %10 = arith.select %8, %9, %6 : vector<32x4xi1>, vector<32x4xf32>
    %c15_i32 = arith.constant 15 : i32
    %11 = vector.broadcast %c15_i32 : i32 to vector<32x1xi32>
    %12 = arith.cmpi eq, %3, %11 : vector<32x1xi32>
    %c31_i32 = arith.constant 31 : i32
    %13 = tpu.dynamic_rotate %1 by %c31_i32 dim 0 : vector<32x4xf32>, i32 -> vector<32x4xf32>
    %cst_2 = arith.constant 0.000000e+00 : f32
    %14 = vector.shape_cast %12 : vector<32x1xi1> to vector<32x1xi1>
    %15 = vector.broadcast %14 : vector<32x1xi1> to vector<32x4xi1>
    %16 = vector.broadcast %cst_2 : f32 to vector<32x4xf32>
    %17 = arith.select %15, %16, %13 : vector<32x4xi1>, vector<32x4xf32>
    %c0_3 = arith.constant 0 : index
    %c0_4 = arith.constant 0 : index
    %c0_5 = arith.constant 0 : index
    %18 = vector.load %arg3[%c0_3, %c0_4, %c0_5] : memref<3x4x32xf32, #tpu.memory_space<vmem>>, vector<1x4x32xf32>
    %19 = vector.shape_cast %18 : vector<1x4x32xf32> to vector<4x32xf32>
    %cst_6 = arith.constant dense<0.000000e+00> : vector<32x32xf32>
    %20 = tpu.matmul %10, %19, %cst_6 {dimension_numbers = #tpu.dot_dimension_numbers<[1], [0], [0], [1], [0, 0, 1, 1], [], []>} : vector<32x4xf32>, vector<4x32xf32>, vector<32x32xf32> -> vector<32x32xf32>
    %c1 = arith.constant 1 : index
    %c0_7 = arith.constant 0 : index
    %c0_8 = arith.constant 0 : index
    %21 = vector.load %arg3[%c1, %c0_7, %c0_8] : memref<3x4x32xf32, #tpu.memory_space<vmem>>, vector<1x4x32xf32>
    %22 = vector.shape_cast %21 : vector<1x4x32xf32> to vector<4x32xf32>
    %cst_9 = arith.constant dense<0.000000e+00> : vector<32x32xf32>
    %23 = tpu.matmul %1, %22, %cst_9 {dimension_numbers = #tpu.dot_dimension_numbers<[1], [0], [0], [1], [0, 0, 1, 1], [], []>} : vector<32x4xf32>, vector<4x32xf32>, vector<32x32xf32> -> vector<32x32xf32>
    %24 = arith.addf %20, %23 : vector<32x32xf32>
    %c2 = arith.constant 2 : index
    %c0_10 = arith.constant 0 : index
    %c0_11 = arith.constant 0 : index
    %25 = vector.load %arg3[%c2, %c0_10, %c0_11] : memref<3x4x32xf32, #tpu.memory_space<vmem>>, vector<1x4x32xf32>
    %26 = vector.shape_cast %25 : vector<1x4x32xf32> to vector<4x32xf32>
    %cst_12 = arith.constant dense<0.000000e+00> : vector<32x32xf32>
    %27 = tpu.matmul %17, %26, %cst_12 {dimension_numbers = #tpu.dot_dimension_numbers<[1], [0], [0], [1], [0, 0, 1, 1], [], []>} : vector<32x4xf32>, vector<4x32xf32>, vector<32x32xf32> -> vector<32x32xf32>
    %28 = arith.addf %24, %27 : vector<32x32xf32>
    %c0_i32_13 = arith.constant 0 : i32
    %29 = arith.cmpi eq, %arg0, %c0_i32_13 : i32
    %c0_i32_14 = arith.constant 0 : i32
    %30 = arith.cmpi eq, %arg1, %c0_i32_14 : i32
    %31 = arith.andi %29, %30 : i1
    %32 = arith.extui %31 : i1 to i32
    %c0_i32_15 = arith.constant 0 : i32
    %33 = arith.cmpi ne, %32, %c0_i32_15 : i32
    scf.if %33 {
      %cst_23 = arith.constant 0.000000e+00 : f32
      %45 = vector.broadcast %cst_23 : f32 to vector<1x32xf32>
      %c0_24 = arith.constant 0 : index
      %c0_25 = arith.constant 0 : index
      %46 = vector.load %arg7[%c0_24, %c0_25] : memref<1x32xf32, #tpu.memory_space<vmem>>, vector<1x32xf32>
      tpu.vector_store %arg7[%c0_24, %c0_25], %45 {strides = array<i32>} : memref<1x32xf32, #tpu.memory_space<vmem>>, vector<1x32xf32>,
      %cst_26 = arith.constant 0.000000e+00 : f32
      %47 = vector.broadcast %cst_26 : f32 to vector<1x32xf32>
      %c0_27 = arith.constant 0 : index
      %c0_28 = arith.constant 0 : index
      %48 = vector.load %arg8[%c0_27, %c0_28] : memref<1x32xf32, #tpu.memory_space<vmem>>, vector<1x32xf32>
      tpu.vector_store %arg8[%c0_27, %c0_28], %47 {strides = array<i32>} : memref<1x32xf32, #tpu.memory_space<vmem>>, vector<1x32xf32>,
    } else {
    }
    %c0_i32_16 = arith.constant 0 : i32
    %34 = arith.cmpi eq, %arg0, %c0_i32_16 : i32
    %35 = arith.extui %34 : i1 to i32
    %c0_i32_17 = arith.constant 0 : i32
    %36 = arith.cmpi ne, %35, %c0_i32_17 : i32
    scf.if %36 {
      %c0_23 = arith.constant 0 : index
      %c0_24 = arith.constant 0 : index
      %45 = vector.load %arg7[%c0_23, %c0_24] : memref<1x32xf32, #tpu.memory_space<vmem>>, vector<1x32xf32>
      %cst_25 = arith.constant dense<0.000000e+00> : vector<32xf32>
      %46 = vector.multi_reduction <add>, %28, %cst_25 [0] : vector<32x32xf32> to vector<32xf32>
      %47 = vector.shape_cast %46 : vector<32xf32> to vector<1x32xf32>
      %48 = arith.addf %45, %47 : vector<1x32xf32>
      %c0_26 = arith.constant 0 : index
      %c0_27 = arith.constant 0 : index
      %49 = vector.load %arg7[%c0_26, %c0_27] : memref<1x32xf32, #tpu.memory_space<vmem>>, vector<1x32xf32>
      tpu.vector_store %arg7[%c0_26, %c0_27], %48 {strides = array<i32>} : memref<1x32xf32, #tpu.memory_space<vmem>>, vector<1x32xf32>,
      %c0_28 = arith.constant 0 : index
      %c0_29 = arith.constant 0 : index
      %50 = vector.load %arg8[%c0_28, %c0_29] : memref<1x32xf32, #tpu.memory_space<vmem>>, vector<1x32xf32>
      %51 = arith.mulf %28, %28 : vector<32x32xf32>
      %cst_30 = arith.constant dense<0.000000e+00> : vector<32xf32>
      %52 = vector.multi_reduction <add>, %51, %cst_30 [0] : vector<32x32xf32> to vector<32xf32>
      %53 = vector.shape_cast %52 : vector<32xf32> to vector<1x32xf32>
      %54 = arith.addf %50, %53 : vector<1x32xf32>
      %c0_31 = arith.constant 0 : index
      %c0_32 = arith.constant 0 : index
      %55 = vector.load %arg8[%c0_31, %c0_32] : memref<1x32xf32, #tpu.memory_space<vmem>>, vector<1x32xf32>
      tpu.vector_store %arg8[%c0_31, %c0_32], %54 {strides = array<i32>} : memref<1x32xf32, #tpu.memory_space<vmem>>, vector<1x32xf32>,
    } else {
    }
    %c0_i32_18 = arith.constant 0 : i32
    %37 = arith.cmpi eq, %arg0, %c0_i32_18 : i32
    %c0_i32_19 = arith.constant 0 : i32
    %38 = arith.cmpi eq, %arg1, %c0_i32_19 : i32
    %39 = arith.andi %37, %38 : i1
    %40 = arith.extui %39 : i1 to i32
    %c0_i32_20 = arith.constant 0 : i32
    %41 = arith.cmpi ne, %40, %c0_i32_20 : i32
    scf.if %41 {
      %c0_23 = arith.constant 0 : index
      %c0_24 = arith.constant 0 : index
      %45 = vector.load %arg7[%c0_23, %c0_24] : memref<1x32xf32, #tpu.memory_space<vmem>>, vector<1x32xf32>
      %cst_25 = arith.constant 3.125000e-02 : f32
      %46 = vector.broadcast %cst_25 : f32 to vector<1x32xf32>
      %47 = arith.mulf %45, %46 : vector<1x32xf32>
      %c0_26 = arith.constant 0 : index
      %c0_27 = arith.constant 0 : index
      %48 = vector.load %arg8[%c0_26, %c0_27] : memref<1x32xf32, #tpu.memory_space<vmem>>, vector<1x32xf32>
      %cst_28 = arith.constant 3.125000e-02 : f32
      %49 = vector.broadcast %cst_28 : f32 to vector<1x32xf32>
      %50 = arith.mulf %48, %49 : vector<1x32xf32>
      %51 = arith.mulf %47, %47 : vector<1x32xf32>
      %52 = arith.subf %50, %51 : vector<1x32xf32>
      %cst_29 = arith.constant 0.000000e+00 : f32
      %53 = vector.broadcast %cst_29 : f32 to vector<1x32xf32>
      %54 = arith.maximumf %52, %53 : vector<1x32xf32>
      %c0_30 = arith.constant 0 : index
      %c0_31 = arith.constant 0 : index
      %55 = vector.load %arg4[%c0_30, %c0_31] : memref<1x32xf32, #tpu.memory_space<vmem>>, vector<1x32xf32>
      %cst_32 = arith.constant 9.99999974E-6 : f32
      %56 = vector.broadcast %cst_32 : f32 to vector<1x32xf32>
      %57 = arith.addf %54, %56 : vector<1x32xf32>
      %58 = math.rsqrt %57 : vector<1x32xf32>
      %59 = arith.mulf %55, %58 : vector<1x32xf32>
      %c0_33 = arith.constant 0 : index
      %c0_34 = arith.constant 0 : index
      %60 = vector.load %arg9[%c0_33, %c0_34] : memref<1x32xf32, #tpu.memory_space<vmem>>, vector<1x32xf32>
      tpu.vector_store %arg9[%c0_33, %c0_34], %59 {strides = array<i32>} : memref<1x32xf32, #tpu.memory_space<vmem>>, vector<1x32xf32>,
      %c0_35 = arith.constant 0 : index
      %c0_36 = arith.constant 0 : index
      %61 = vector.load %arg5[%c0_35, %c0_36] : memref<1x32xf32, #tpu.memory_space<vmem>>, vector<1x32xf32>
      %62 = arith.mulf %47, %59 : vector<1x32xf32>
      %63 = arith.subf %61, %62 : vector<1x32xf32>
      %c0_37 = arith.constant 0 : index
      %c0_38 = arith.constant 0 : index
      %64 = vector.load %arg10[%c0_37, %c0_38] : memref<1x32xf32, #tpu.memory_space<vmem>>, vector<1x32xf32>
      tpu.vector_store %arg10[%c0_37, %c0_38], %63 {strides = array<i32>} : memref<1x32xf32, #tpu.memory_space<vmem>>, vector<1x32xf32>,
    } else {
    }
    %c1_i32_21 = arith.constant 1 : i32
    %42 = arith.cmpi eq, %arg0, %c1_i32_21 : i32
    %43 = arith.extui %42 : i1 to i32
    %c0_i32_22 = arith.constant 0 : i32
    %44 = arith.cmpi ne, %43, %c0_i32_22 : i32
    scf.if %44 {
      %c0_23 = arith.constant 0 : index
      %c0_24 = arith.constant 0 : index
      %45 = vector.load %arg9[%c0_23, %c0_24] : memref<1x32xf32, #tpu.memory_space<vmem>>, vector<1x32xf32>
      %46 = vector.broadcast %45 : vector<1x32xf32> to vector<32x32xf32>
      %47 = arith.mulf %28, %46 : vector<32x32xf32>
      %c0_25 = arith.constant 0 : index
      %c0_26 = arith.constant 0 : index
      %48 = vector.load %arg10[%c0_25, %c0_26] : memref<1x32xf32, #tpu.memory_space<vmem>>, vector<1x32xf32>
      %49 = vector.broadcast %48 : vector<1x32xf32> to vector<32x32xf32>
      %50 = arith.addf %47, %49 : vector<32x32xf32>
      %cst_27 = arith.constant 0.000000e+00 : f32
      %51 = vector.broadcast %cst_27 : f32 to vector<32x32xf32>
      %52 = arith.maximumf %50, %51 : vector<32x32xf32>
      %53 = vector.shape_cast %52 : vector<32x32xf32> to vector<2x16x32xf32>
      %c0_28 = arith.constant 0 : index
      %c0_29 = arith.constant 0 : index
      %c0_30 = arith.constant 0 : index
      %54 = vector.load %arg6[%c0_28, %c0_29, %c0_30] : memref<2x16x32xf32, #tpu.memory_space<vmem>>, vector<2x16x32xf32>
      tpu.vector_store %arg6[%c0_28, %c0_29, %c0_30], %53 {strides = array<i32>} : memref<2x16x32xf32, #tpu.memory_space<vmem>>, vector<2x16x32xf32>,
    } else {
    }
    return
  }
  func.func @transform_0(%arg0: i32, %arg1: i32) -> (i32, i32, i32) {
    %c0_i32 = arith.constant 0 : i32
    %c0_i32_0 = arith.constant 0 : i32
    %c0_i32_1 = arith.constant 0 : i32
    return %arg1, %c0_i32, %c0_i32_0 : i32, i32, i32
  }
  func.func @transform_1(%arg0: i32, %arg1: i32) -> (i32, i32, i32) {
    %c0_i32 = arith.constant 0 : i32
    %c0_i32_0 = arith.constant 0 : i32
    %c0_i32_1 = arith.constant 0 : i32
    %c0_i32_2 = arith.constant 0 : i32
    return %c0_i32, %c0_i32_0, %c0_i32_1 : i32, i32, i32
  }
  func.func @transform_2(%arg0: i32, %arg1: i32) -> (i32, i32) {
    %c0_i32 = arith.constant 0 : i32
    %c0_i32_0 = arith.constant 0 : i32
    %c0_i32_1 = arith.constant 0 : i32
    return %c0_i32, %c0_i32_0 : i32, i32
  }
  func.func @transform_3(%arg0: i32, %arg1: i32) -> (i32, i32) {
    %c0_i32 = arith.constant 0 : i32
    %c0_i32_0 = arith.constant 0 : i32
    %c0_i32_1 = arith.constant 0 : i32
    return %c0_i32, %c0_i32_0 : i32, i32
  }
  func.func @transform_4(%arg0: i32, %arg1: i32) -> (i32, i32, i32) {
    %0 = arith.muli %arg0, %arg1 : i32
    %c0_i32 = arith.constant 0 : i32
    %c0_i32_0 = arith.constant 0 : i32
    %c0_i32_1 = arith.constant 0 : i32
    return %0, %c0_i32, %c0_i32_0 : i32, i32, i32
  }
}

</mosaic_0001>

<llo_original>
// kernel: encoder_forward.5
$region0: #{encoder_forward.5}
  #allocation0 [shape = 'u32[]', space=smem, size = 0x4, offset = 0x4, fixed_abs, tag = 'smem constant byte address 0x4 - core index']
  #allocation1 [shape = 'u32[72,128]{1,0:T(1,128)}', space=vmem, size = 0x9000, scoped, tag = 'internal scratch']
  #allocation2 [shape = 'f32[1,128]{1,0:T(1,128)}', space=vmem, size = 0x200, scoped, tag = 'scratch operand']
  #allocation3 [shape = 'f32[1,128]{1,0:T(1,128)}', space=vmem, size = 0x200, scoped, tag = 'scratch operand']
  #allocation4 [shape = 'f32[1,128]{1,0:T(1,128)}', space=vmem, size = 0x200, scoped, tag = 'scratch operand']
  #allocation5 [shape = 'f32[1,128]{1,0:T(1,128)}', space=vmem, size = 0x200, scoped, tag = 'scratch operand']
  %s0 = inlined_call_operand.vmem [shape: f32[2,16,64], index: 0, kind: input, shape index: {}]
  %s1 = inlined_call_operand.hbm [shape: f32[3,64,128], index: 1, kind: input, shape index: {}]
  %s2 = inlined_call_operand.vmem [shape: f32[1,128], index: 2, kind: input, shape index: {}]
  %s3 = inlined_call_operand.vmem [shape: f32[1,128], index: 3, kind: input, shape index: {}]
  %s4 = inlined_call_operand.hbm [shape: f32[2,16,128], index: 4, kind: output, shape index: {}]
  %s5 = sld [smem:[#allocation0]]
  $region69: #{encoder_forward.5} parent=0
    _
  %s7 = ssub.s32 1, %s5
  %s8 = scalar_select 0, %s7, %s5
  $region1: #{encoder_forward.5} parent=0
    #allocation6 [shape = 'u8[98304]{0}', space=vmem, size = 0x18000, scoped, tag = 'input window, operand 1, single buffered']
    #allocation7 [shape = 's32[2]{0}', space=sflag, size = 0x8, scoped, tag = 'scoped memory for encoder_forward.5']
    #allocation8 [shape = 's32[2]{0}', space=sflag, size = 0x8, scoped, tag = 'scoped memory for encoder_forward.5']
    #allocation9 [shape = 'u8[32768]{0}', space=vmem, size = 0x8000, scoped, tag = 'output window, operand 0']
    %9 = vsyncpa [#allocation7], 0
    %10 = vsyncpa [#allocation8], 0
    %s11 = scalar_lea.sflag [#allocation8], 1
    %12 = vsyncpa %s11, 0
    loop: start=0, step=1, limit=4
    $region2: #{encoder_forward.5} parent=1 // loop_pre_header
      _
    $region3: #{encoder_forward.5} parent=1 // loop_header
      %s14 = sphi 0, %s18
      %p15 = scmp.ge.s32.totalorder %s14, 4
      %s21 = sphi 0, %s33
      %s22 = sphi 0, %s29
      %s23 = sphi 0, %s21
      %s24 = sphi 0, %s22
      %s25 = sphi 0, %s23
      %s26 = sphi 0, %s24
      %s36 = sphi 0, %s38
      %s39 = sphi 0, %s36
      %s40 = sphi 0, %s39
      %s56 = sphi 0, %s40
      %s60 = sphi 0, %s60
      %s62 = sphi 0, %s60
      %s63 = sphi 0, %s62
      %s77 = sphi 0, %s63
      %s81 = sphi 0, %s81
      %s83 = sphi 0, %s81
      %s84 = sphi 0, %s83
      %s98 = sphi 0, %s84
      %s102 = sphi 0, %s102
      %s104 = sphi 0, %s102
      %s105 = sphi 0, %s104
      %s119 = sphi 0, %s105
      %s127 = sphi 0, %s129
      %s130 = sphi 0, %s127
      %s131 = sphi 0, %s130
      %s147 = sphi 0, %s131
    $region4: #{encoder_forward.5} parent=1 // loop_header_branch
      %17 = sbr.rel (%p15) target = $region8
    $region5: #{encoder_forward.5} parent=1 // loop_body
      %s19 = ssub.s32 %s14, 1
      %s20 = ssub.s32 %s14, 2
      %s27 = sadd.s32 1, %s22
      %p28 = scmp.ge.s32.totalorder %s27, 1
      %s29 = scalar_select %p28, 0, %s27
      %s30 = sadd.s32 1, %s21
      %s31 = scalar_select %p28, %s30, %s21
      %p32 = scmp.ge.s32.totalorder %s31, 2
      %s33 = scalar_select %p32, 0, %s31
      %s34 = ssub.s32 %s22, %s29
      %p35 = scmp.eq.s32.totalorder %s34, 0
      %s37 = sadd.s32 %s36, 1
      %s38 = scalar_select %p35, %s36, %s37
      %p41 = pneg %p35
      %p42 = scmp.eq.s32.totalorder %s14, 1
      %p43 = por %p41, %p42
      %p44 = scmp.ne.s32.totalorder %s36, %s39
      %p45 = scmp.eq.s32.totalorder %s14, 0
      %p46 = por %p44, %p45
      %p47 = scmp.ne.s32.totalorder %s36, %s39
      %p48 = scmp.eq.s32.totalorder %s19, 1
      %p49 = por %p47, %p48
      %p50 = scmp.ne.s32.totalorder %s39, %s40
      %p51 = scmp.eq.s32.totalorder %s19, 0
      %p52 = por %p50, %p51
      %p53 = scmp.ne.s32.totalorder %s39, %s40
      %p54 = scmp.eq.s32.totalorder %s20, 1
      %p55 = por %p53, %p54
      %p57 = scmp.ne.s32.totalorder %s40, %s56
      %p58 = scmp.eq.s32.totalorder %s20, 0
      %p59 = por %p57, %p58
      %s61 = sadd.s32 %s60, 1
      %p64 = scmp.eq.s32.totalorder %s14, 1
      %p65 = scmp.ne.s32.totalorder %s60, %s62
      %p66 = scmp.eq.s32.totalorder %s14, 0
      %p67 = por %p65, %p66
      %p68 = scmp.ne.s32.totalorder %s60, %s62
      %p69 = scmp.eq.s32.totalorder %s19, 1
      %p70 = por %p68, %p69
      %p71 = scmp.ne.s32.totalorder %s62, %s63
      %p72 = scmp.eq.s32.totalorder %s19, 0
      %p73 = por %p71, %p72
      %p74 = scmp.ne.s32.totalorder %s62, %s63
      %p75 = scmp.eq.s32.totalorder %s20, 1
      %p76 = por %p74, %p75
      %p78 = scmp.ne.s32.totalorder %s63, %s77
      %p79 = scmp.eq.s32.totalorder %s20, 0
      %p80 = por %p78, %p79
      %s82 = sadd.s32 %s81, 1
      %p85 = scmp.eq.s32.totalorder %s14, 1
      %p86 = scmp.ne.s32.totalorder %s81, %s83
      %p87 = scmp.eq.s32.totalorder %s14, 0
      %p88 = por %p86, %p87
      %p89 = scmp.ne.s32.totalorder %s81, %s83
      %p90 = scmp.eq.s32.totalorder %s19, 1
      %p91 = por %p89, %p90
      %p92 = scmp.ne.s32.totalorder %s83, %s84
      %p93 = scmp.eq.s32.totalorder %s19, 0
      %p94 = por %p92, %p93
      %p95 = scmp.ne.s32.totalorder %s83, %s84
      %p96 = scmp.eq.s32.totalorder %s20, 1
      %p97 = por %p95, %p96
      %p99 = scmp.ne.s32.totalorder %s84, %s98
      %p100 = scmp.eq.s32.totalorder %s20, 0
      %p101 = por %p99, %p100
      %s103 = sadd.s32 %s102, 1
      %p106 = scmp.eq.s32.totalorder %s14, 1
      %p107 = scmp.ne.s32.totalorder %s102, %s104
      %p108 = scmp.eq.s32.totalorder %s14, 0
      %p109 = por %p107, %p108
      %p110 = scmp.ne.s32.totalorder %s102, %s104
      %p111 = scmp.eq.s32.totalorder %s19, 1
      %p112 = por %p110, %p111
      %p113 = scmp.ne.s32.totalorder %s104, %s105
      %p114 = scmp.eq.s32.totalorder %s19, 0
      %p115 = por %p113, %p114
      %p116 = scmp.ne.s32.totalorder %s104, %s105
      %p117 = scmp.eq.s32.totalorder %s20, 1
      %p118 = por %p116, %p117
      %p120 = scmp.ne.s32.totalorder %s105, %s119
      %p121 = scmp.eq.s32.totalorder %s20, 0
      %p122 = por %p120, %p121
      %s123 = smul.u32 %s21, %s22
      %s124 = smul.u32 %s33, %s29
      %s125 = ssub.s32 %s123, %s124
      %p126 = scmp.eq.s32.totalorder %s125, 0
      %s128 = sadd.s32 %s127, 1
      %s129 = scalar_select %p126, %s127, %s128
      %p132 = pneg %p126
      %p133 = scmp.eq.s32.totalorder %s14, 1
      %p134 = por %p132, %p133
      %p135 = scmp.ne.s32.totalorder %s127, %s130
      %p136 = scmp.eq.s32.totalorder %s14, 0
      %p137 = por %p135, %p136
      %p138 = scmp.ne.s32.totalorder %s127, %s130
      %p139 = scmp.eq.s32.totalorder %s19, 1
      %p140 = por %p138, %p139
      %p141 = scmp.ne.s32.totalorder %s130, %s131
      %p142 = scmp.eq.s32.totalorder %s19, 0
      %p143 = por %p141, %p142
      %p144 = scmp.ne.s32.totalorder %s130, %s131
      %p145 = scmp.eq.s32.totalorder %s20, 1
      %p146 = por %p144, %p145
      %p148 = scmp.ne.s32.totalorder %s131, %s147
      %p149 = scmp.eq.s32.totalorder %s20, 0
      %p150 = por %p148, %p149
      %p151 = scmp.le.s32.totalorder 1, %s14
      %p152 = scmp.lt.s32.totalorder %s14, 3
      %p153 = pnand %p151, %p152
      %p154 = pneg %p153
      // Predicated region
      $region9: #{encoder_forward.5} parent=5 // pred_check
        _
      $region10: #{encoder_forward.5} parent=5 // pred_check_branch
        %156 = sbr.rel (%p153) target = $region12
      $region11: #{encoder_forward.5} parent=5 // pred_region
        %s157 = ssub.s32 %s14, 1
        // Predicated region
        $region13: #{encoder_forward.5} parent=11 // pred_check
          %p158 = pneg %p52
        $region14: #{encoder_forward.5} parent=11 // pred_check_branch
          %160 = sbr.rel (%p158) target = $region16
        $region15: #{encoder_forward.5} parent=11 // pred_region
          %s161 = smul.u32 2, %s24
          %p162 = scmp.lt.s32.totalorder %s161, 1
          %s163 = scalar_select %p162, %s161, 1
          %s164 = smul.addr %s163, 2
          %s165 = smul.addr %s164, 8
          %s166 = scalar_lea.vmem %s0, %s165
          %s167 = smul.u32 2, %s24
        $region16: #{encoder_forward.5} parent=11 // pred_fallthru
          _
        // Predicated region
        $region17: #{encoder_forward.5} parent=11 // pred_check
          %p168 = pneg %p73
        $region18: #{encoder_forward.5} parent=11 // pred_check_branch
          %170 = sbr.rel (%p168) target = $region20
        $region19: #{encoder_forward.5} parent=11 // pred_region
          %172 = vsyncadd [#allocation7], 0
          %s173 = sshll.u32 %s1, 4
          %s174 = int_to_ptr.hbm [resolvable:$true] %s173
          %s175 = sshll.u32 [#allocation6], 4
          %s176 = int_to_ptr.vmem [resolvable:$true] %s175
          %181 = dma.hbm_to_vmem [thread:$0]  %s174, 3072, %s176, [#allocation7], 128, 128, 8
        $region20: #{encoder_forward.5} parent=11 // pred_fallthru
          _
        // Predicated region
        $region21: #{encoder_forward.5} parent=11 // pred_check
          %p182 = pneg %p94
        $region22: #{encoder_forward.5} parent=11 // pred_check_branch
          %184 = sbr.rel (%p182) target = $region24
        $region23: #{encoder_forward.5} parent=11 // pred_region
          _
        $region24: #{encoder_forward.5} parent=11 // pred_fallthru
          _
        // Predicated region
        $region25: #{encoder_forward.5} parent=11 // pred_check
          %p185 = pneg %p115
        $region26: #{encoder_forward.5} parent=11 // pred_check_branch
          %187 = sbr.rel (%p185) target = $region28
        $region27: #{encoder_forward.5} parent=11 // pred_region
          _
        $region28: #{encoder_forward.5} parent=11 // pred_fallthru
          _
      $region12: #{encoder_forward.5} parent=5 // pred_fallthru
        _
      %p188 = scmp.lt.s32.totalorder %s14, 2
      // Predicated region
      $region29: #{encoder_forward.5} parent=5 // pred_check
        %p189 = pneg %p188
      $region30: #{encoder_forward.5} parent=5 // pred_check_branch
        %191 = sbr.rel (%p189) target = $region32
      $region31: #{encoder_forward.5} parent=5 // pred_region
        _
      $region32: #{encoder_forward.5} parent=5 // pred_fallthru
        _
      %p192 = scmp.le.s32.totalorder 1, %s14
      %p193 = scmp.lt.s32.totalorder %s14, 3
      %p194 = pnand %p192, %p193
      %p195 = pneg %p194
      // Predicated region
      $region33: #{encoder_forward.5} parent=5 // pred_check
        _
      $region34: #{encoder_forward.5} parent=5 // pred_check_branch
        %197 = sbr.rel (%p194) target = $region36
      $region35: #{encoder_forward.5} parent=5 // pred_region
        %s198 = ssub.s32 %s14, 1
        // Predicated region
        $region37: #{encoder_forward.5} parent=35 // pred_check
          %p199 = pneg %p73
        $region38: #{encoder_forward.5} parent=35 // pred_check_branch
          %201 = sbr.rel (%p199) target = $region40
        $region39: #{encoder_forward.5} parent=35 // pred_region
          %203 = dma.done [#allocation7], 3072
        $region40: #{encoder_forward.5} parent=35 // pred_fallthru
          _
        %s204 = smul.u32 2, %s24
        %p205 = scmp.lt.s32.totalorder %s204, 1
        %s206 = scalar_select %p205, %s204, 1
        %s207 = smul.addr %s206, 2
        %s208 = smul.addr %s207, 8
        %s209 = scalar_lea.vmem %s0, %s208
        %p210 = pneg %p52
        %p211 = pneg %p49
        %p212 = pneg %p73
        %p213 = pneg %p70
        %p214 = pneg %p94
        %p215 = pneg %p91
        %p216 = pneg %p115
        %p217 = pneg %p112
        %p218 = pneg %p143
        %p219 = pneg %p140
        %s220 = sand.u32 %s130, 1
        %s221 = scalar_lea.sflag [#allocation8], %s220
        %s222 = sand.u32 %s130, 1
        %s223 = smul.addr %s222, 32
        %s224 = scalar_lea.vmem [#allocation9], %s223
        %s225 = smul.u32 2, %s24
        %p226 = scmp.lt.s32.totalorder %s225, 1
        %s227 = scalar_select %p226, %s225, 1
        %s228 = smul.addr %s227, 2
        %s229 = smul.addr %s228, 8
        %s230 = scalar_lea.vmem %s0, %s229
        %s231 = smul.u32 2, %s24
        %s232 = smul.u32 %s23, %s24
        %s233 = smul.u32 2, %s232
        %v234 = vld [vmem:[%s230] sm:$0xff]
        %v235 = vld [vmem:[%s230 + $0x8] sm:$0xff]
        %v236 = vld [vmem:[%s230 + $0x10] sm:$0xff]
        %v237 = vld [vmem:[%s230 + $0x18] sm:$0xff]
        %v238 = vlaneseq
        %v239 = vshrl.u32 %v238, 7
        %v240 = vadd.s32 %v239, 8
        %vm241 = vcmp.eq.s32.totalorder %v239, 0
        %vm242 = vcmp.eq.s32.totalorder %v240, 0
        %v243 = vrot.slane %v234, 7
        %v244 = vrot.slane %v235, 7
        %v245 = vrot.slane %v236, 7
        %v246 = vrot.slane %v237, 7
        %vm247 = vcmp.lt.s32.totalorder %v239, 1
        %v248 = vsel %vm247, %v245, %v246
        %v249 = vsel %vm247, %v244, %v245
        %v250 = vsel %vm247, %v243, %v244
        %v251 = vsel %vm247, %v246, %v243
        %v252 = vsel %vm241, 1, 0
        %v253 = vsel %vm242, 1, 0
        %vm254 = vcmp.eq.s32.totalorder %v252, 1
        %vm255 = vcmp.eq.s32.totalorder %v253, 1
        %v256 = vsel %vm254, 0.0, %v251
        %v257 = vsel %vm255, 0.0, %v250
        %v258 = vsel %vm254, 0.0, %v249
        %v259 = vsel %vm255, 0.0, %v248
        %vm260 = vcmp.eq.s32.totalorder %v239, 15
        %vm261 = vcmp.eq.s32.totalorder %v240, 15
        %v262 = vrot.slane %v234, 1
        %v263 = vrot.slane %v235, 1
        %v264 = vrot.slane %v236, 1
        %v265 = vrot.slane %v237, 1
        %vm266 = vcmp.lt.s32.totalorder %v239, 7
        %v267 = vsel %vm266, %v264, %v265
        %v268 = vsel %vm266, %v263, %v264
        %v269 = vsel %vm266, %v262, %v263
        %v270 = vsel %vm266, %v265, %v262
        %v271 = vsel %vm260, 1, 0
        %v272 = vsel %vm261, 1, 0
        %vm273 = vcmp.eq.s32.totalorder %v271, 1
        %vm274 = vcmp.eq.s32.totalorder %v272, 1
        %v275 = vsel %vm273, 0.0, %v269
        %v276 = vsel %vm274, 0.0, %v268
        %v277 = vsel %vm273, 0.0, %v267
        %v278 = vsel %vm274, 0.0, %v270
        %v279 = vld [vmem:[#allocation6] sm:$0xff]
        %v280 = vld [vmem:[#allocation6 + $0x8] sm:$0xff]
        %v281 = vld [vmem:[#allocation6 + $0x10] sm:$0xff]
        %v282 = vld [vmem:[#allocation6 + $0x18] sm:$0xff]
        %v283 = vld [vmem:[#allocation6 + $0x20] sm:$0xff]
        %v284 = vld [vmem:[#allocation6 + $0x28] sm:$0xff]
        %v285 = vld [vmem:[#allocation6 + $0x30] sm:$0xff]
        %v286 = vld [vmem:[#allocation6 + $0x38] sm:$0xff]
        %s287 = scalar_lea.vmem [#allocation6], 64
        %v288 = vld [vmem:[%s287] sm:$0xff]
        %v289 = vld [vmem:[%s287 + $0x8] sm:$0xff]
        %v290 = vld [vmem:[%s287 + $0x10] sm:$0xff]
        %v291 = vld [vmem:[%s287 + $0x18] sm:$0xff]
        %v292 = vld [vmem:[%s287 + $0x20] sm:$0xff]
        %v293 = vld [vmem:[%s287 + $0x28] sm:$0xff]
        %v294 = vld [vmem:[%s287 + $0x30] sm:$0xff]
        %v295 = vld [vmem:[%s287 + $0x38] sm:$0xff]
        %vm296 = vcmask 523264
        %v298 = vsel %vm296, %v234, 0
        %v301 = vsel %vm296, %v235, 0
        %v304 = vsel %vm296, %v236, 0
        %v307 = vsel %vm296, %v237, 0
        %309 = vmatpush.msra.mxu0 0.0
        %310 = vmatpush.msra.mxu0 0.0
        %311 = vmatpush.msra.mxu0 0.0
        %312 = vmatpush.msra.mxu0 0.0
        %313 = vmatpush.msra.mxu0 0.0
        %314 = vmatpush.msra.mxu0 0.0
        %315 = vmatpush.msra.mxu0 0.0
        %316 = vmatpush.msra.mxu0 0.0
        %317 = vmatpush.msra.mxu0 %v295
        %318 = vmatpush.msra.mxu0 %v294
        %319 = vmatpush.msra.mxu0 %v293
        %320 = vmatpush.msra.mxu0 %v292
        %321 = vmatpush.msra.mxu0 %v291
        %322 = vmatpush.msra.mxu0 %v290
        %323 = vmatpush.msra.mxu0 %v289
        %324 = vmatpush.msra.mxu0 %v288
        %325 = vmatmul.f32.gmra.mxu0 %v298
        %v326 = vpop.f32.mrf.mxu0
        %v327 = vadd.f32 0.0, %v326
        %328 = vmatmul.f32.gmra.mxu0 %v301
        %v329 = vpop.f32.mrf.mxu0
        %v330 = vadd.f32 0.0, %v329
        %331 = vmatmul.f32.gmra.mxu0 %v304
        %v332 = vpop.f32.mrf.mxu0
        %v333 = vadd.f32 0.0, %v332
        %334 = vmatmul.f32.gmra.mxu0 %v307
        %v335 = vpop.f32.mrf.mxu0
        %v336 = vadd.f32 0.0, %v335
        %337 = vdwg.mxu0
        %v339 = vsel %vm296, %v256, 0
        %v342 = vsel %vm296, %v257, 0
        %v345 = vsel %vm296, %v258, 0
        %v348 = vsel %vm296, %v259, 0
        %350 = vmatpush.msra.mxu0 0.0
        %351 = vmatpush.msra.mxu0 0.0
        %352 = vmatpush.msra.mxu0 0.0
        %353 = vmatpush.msra.mxu0 0.0
        %354 = vmatpush.msra.mxu0 0.0
        %355 = vmatpush.msra.mxu0 0.0
        %356 = vmatpush.msra.mxu0 0.0
        %357 = vmatpush.msra.mxu0 0.0
        %358 = vmatpush.msra.mxu0 %v286
        %359 = vmatpush.msra.mxu0 %v285
        %360 = vmatpush.msra.mxu0 %v284
        %361 = vmatpush.msra.mxu0 %v283
        %362 = vmatpush.msra.mxu0 %v282
        %363 = vmatpush.msra.mxu0 %v281
        %364 = vmatpush.msra.mxu0 %v280
        %365 = vmatpush.msra.mxu0 %v279
        %366 = vmatmul.f32.gmra.mxu0 %v339
        %v367 = vpop.f32.mrf.mxu0
        %v368 = vadd.f32 %v327, %v367
        %369 = vmatmul.f32.gmra.mxu0 %v342
        %v370 = vpop.f32.mrf.mxu0
        %v371 = vadd.f32 %v330, %v370
        %372 = vmatmul.f32.gmra.mxu0 %v345
        %v373 = vpop.f32.mrf.mxu0
        %v374 = vadd.f32 %v333, %v373
        %375 = vmatmul.f32.gmra.mxu0 %v348
        %v376 = vpop.f32.mrf.mxu0
        %v377 = vadd.f32 %v336, %v376
        %378 = vdwg.mxu0
        %s379 = scalar_lea.vmem [#allocation6], 128
        %v380 = vld [vmem:[%s379] sm:$0xff]
        %v381 = vld [vmem:[%s379 + $0x8] sm:$0xff]
        %v382 = vld [vmem:[%s379 + $0x10] sm:$0xff]
        %v383 = vld [vmem:[%s379 + $0x18] sm:$0xff]
        %v384 = vld [vmem:[%s379 + $0x20] sm:$0xff]
        %v385 = vld [vmem:[%s379 + $0x28] sm:$0xff]
        %v386 = vld [vmem:[%s379 + $0x30] sm:$0xff]
        %v387 = vld [vmem:[%s379 + $0x38] sm:$0xff]
        %v389 = vsel %vm296, %v275, 0
        %v392 = vsel %vm296, %v276, 0
        %v395 = vsel %vm296, %v277, 0
        %v398 = vsel %vm296, %v278, 0
        %400 = vmatpush.msra.mxu0 0.0
        %401 = vmatpush.msra.mxu0 0.0
        %402 = vmatpush.msra.mxu0 0.0
        %403 = vmatpush.msra.mxu0 0.0
        %404 = vmatpush.msra.mxu0 0.0
        %405 = vmatpush.msra.mxu0 0.0
        %406 = vmatpush.msra.mxu0 0.0
        %407 = vmatpush.msra.mxu0 0.0
        %408 = vmatpush.msra.mxu0 %v387
        %409 = vmatpush.msra.mxu0 %v386
        %410 = vmatpush.msra.mxu0 %v385
        %411 = vmatpush.msra.mxu0 %v384
        %412 = vmatpush.msra.mxu0 %v383
        %413 = vmatpush.msra.mxu0 %v382
        %414 = vmatpush.msra.mxu0 %v381
        %415 = vmatpush.msra.mxu0 %v380
        %416 = vmatmul.f32.gmra.mxu0 %v389
        %v417 = vpop.f32.mrf.mxu0
        %v418 = vadd.f32 0.0, %v417
        %419 = vmatmul.f32.gmra.mxu0 %v392
        %v420 = vpop.f32.mrf.mxu0
        %v421 = vadd.f32 0.0, %v420
        %422 = vmatmul.f32.gmra.mxu0 %v395
        %v423 = vpop.f32.mrf.mxu0
        %v424 = vadd.f32 0.0, %v423
        %425 = vmatmul.f32.gmra.mxu0 %v398
        %v426 = vpop.f32.mrf.mxu0
        %v427 = vadd.f32 0.0, %v426
        %428 = vdwg.mxu0
        %v429 = vadd.f32 %v368, %v418
        %v430 = vadd.f32 %v371, %v421
        %v431 = vadd.f32 %v374, %v424
        %v432 = vadd.f32 %v377, %v427
        %p433 = scmp.eq.s32.totalorder %s23, 0
        %p434 = scmp.eq.s32.totalorder %s24, 0
        %p435 = pnand %p433, %p434
        %p436 = pneg %p435
        // Predicated region
        $region41: #{encoder_forward.5} parent=35 // pred_check
          _
        $region42: #{encoder_forward.5} parent=35 // pred_check_branch
          %438 = sbr.rel (%p435) target = $region44
        $region43: #{encoder_forward.5} parent=35 // pred_region
          %439 = vst [vmem:[#allocation2] sm:$0x1] 0.0
          %440 = vst [vmem:[#allocation3] sm:$0x1] 0.0
        $region44: #{encoder_forward.5} parent=35 // pred_fallthru
          _
        // Predicated region
        $region45: #{encoder_forward.5} parent=35 // pred_check
          %p441 = pneg %p433
        $region46: #{encoder_forward.5} parent=35 // pred_check_branch
          %443 = sbr.rel (%p441) target = $region48
        $region47: #{encoder_forward.5} parent=35 // pred_region
          %v444 = vld [vmem:[#allocation2] sm:$0x1]
          %v445 = vadd.f32 %v429, %v430
          %v446 = vadd.f32 %v445, %v431
          %v447 = vadd.f32 %v446, %v432
          %v448 = vrot.slane %v447, 4
          %v449 = vadd.f32 %v447, %v448
          %v450 = vrot.slane %v449, 2
          %v451 = vadd.f32 %v449, %v450
          %v452 = vrot.slane %v451, 1
          %v453 = vadd.f32 %v451, %v452
          %v454 = vadd.f32 %v444, %v453
          %455 = vst [vmem:[#allocation2] sm:$0x1] %v454
          %v456 = vld [vmem:[#allocation3] sm:$0x1]
          %v457 = vmul.f32 %v429, %v429
          %v458 = vmul.f32 %v430, %v430
          %v459 = vmul.f32 %v431, %v431
          %v460 = vmul.f32 %v432, %v432
          %v461 = vadd.f32 %v457, %v458
          %v462 = vadd.f32 %v461, %v459
          %v463 = vadd.f32 %v462, %v460
          %v464 = vrot.slane %v463, 4
          %v465 = vadd.f32 %v463, %v464
          %v466 = vrot.slane %v465, 2
          %v467 = vadd.f32 %v465, %v466
          %v468 = vrot.slane %v467, 1
          %v469 = vadd.f32 %v467, %v468
          %v470 = vadd.f32 %v456, %v469
          %471 = vst [vmem:[#allocation3] sm:$0x1] %v470
        $region48: #{encoder_forward.5} parent=35 // pred_fallthru
          _
        // Predicated region
        $region49: #{encoder_forward.5} parent=35 // pred_check
          _
        $region50: #{encoder_forward.5} parent=35 // pred_check_branch
          %473 = sbr.rel (%p435) target = $region52
        $region51: #{encoder_forward.5} parent=35 // pred_region
          %v474 = vld [vmem:[#allocation2] sm:$0x1]
          %v475 = vmul.f32 %v474, 0.03125
          %v476 = vld [vmem:[#allocation3] sm:$0x1]
          %v477 = vmul.f32 %v476, 0.03125
          %v478 = vmul.f32 %v475, %v475
          %v479 = vsub.f32 %v477, %v478
          %v480 = vmax.f32 %v479, 0.0
          %v481 = vld [vmem:[%s2] sm:$0x1]
          %v482 = vadd.f32 %v480, 1e-05
          %v483 = vrsqrt.pop %v482
          %v484 = vmul.f32 %v483, %v482
          %v485 = vmul.f32 %v484, %v483
          %v486 = vmul.f32 0.5, %v485
          %v487 = vsub.f32 1.5, %v486
          %v488 = vmul.f32 %v483, %v487
          %vm489 = vweird.f32 %v482
          %vm490 = vweird.f32 %v483
          %vm491 = vmor %vm489, %vm490
          %v492 = vsel %vm491, %v483, %v488
          %v493 = vmul.f32 %v481, %v492
          %494 = vst [vmem:[#allocation4] sm:$0x1] %v493
          %v495 = vld [vmem:[%s3] sm:$0x1]
          %v496 = vmul.f32 %v475, %v493
          %v497 = vsub.f32 %v495, %v496
          %498 = vst [vmem:[#allocation5] sm:$0x1] %v497
        $region52: #{encoder_forward.5} parent=35 // pred_fallthru
          _
        %p499 = scmp.eq.s32.totalorder %s23, 1
        // Predicated region
        $region53: #{encoder_forward.5} parent=35 // pred_check
          %p500 = pneg %p499
        $region54: #{encoder_forward.5} parent=35 // pred_check_branch
          %502 = sbr.rel (%p500) target = $region56
        $region55: #{encoder_forward.5} parent=35 // pred_region
          %v503 = vld [vmem:[#allocation4] sm:$0x1]
          %v505 = vperm.slane %v503, 0
          %v507 = vmul.f32 %v429, %v505
          %v508 = vmul.f32 %v430, %v505
          %v509 = vmul.f32 %v431, %v505
          %v510 = vmul.f32 %v432, %v505
          %v511 = vld [vmem:[#allocation5] sm:$0x1]
          %v513 = vperm.slane %v511, 0
          %v515 = vadd.f32 %v507, %v513
          %v516 = vadd.f32 %v508, %v513
          %v517 = vadd.f32 %v509, %v513
          %v518 = vadd.f32 %v510, %v513
          %v519 = vmax.f32 %v515, 0.0
          %v520 = vmax.f32 %v516, 0.0
          %v521 = vmax.f32 %v517, 0.0
          %v522 = vmax.f32 %v518, 0.0
          %523 = vst [vmem:[%s224] sm:$0xff] %v519
          %524 = vst [vmem:[%s224 + $0x8] sm:$0xff] %v520
          %525 = vst [vmem:[%s224 + $0x10] sm:$0xff] %v521
          %526 = vst [vmem:[%s224 + $0x18] sm:$0xff] %v522
        $region56: #{encoder_forward.5} parent=35 // pred_fallthru
          _
        %s527 = sand.u32 %s130, 1
        %s528 = scalar_lea.sflag [#allocation8], %s527
        %s529 = sand.u32 %s130, 1
        %s530 = smul.addr %s529, 32
        %s531 = scalar_lea.vmem [#allocation9], %s530
        // Predicated region
        $region57: #{encoder_forward.5} parent=35 // pred_check
          %p532 = pneg %p140
        $region58: #{encoder_forward.5} parent=35 // pred_check_branch
          %534 = sbr.rel (%p532) target = $region60
        $region59: #{encoder_forward.5} parent=35 // pred_region
          %s535 = smul.u32 %s23, %s24
          %s536 = smul.u32 2, %s535
          %538 = vsyncadd %s528, 0
          %s539 = smul.addr %s536, 2
          %s540 = smul.addr %s539, 8
          %s541 = scalar_lea.hbm %s4, %s540
          %s542 = sshll.u32 %s531, 4
          %s543 = int_to_ptr.vmem [resolvable:$true] %s542
          %s544 = sshll.u32 %s541, 4
          %s545 = int_to_ptr.hbm [resolvable:$true] %s544
          %550 = dma.vmem_to_hbm [thread:$0]  %s543, 512, %s545, %s528, 128, 128, 8
        $region60: #{encoder_forward.5} parent=35 // pred_fallthru
          _
      $region36: #{encoder_forward.5} parent=5 // pred_fallthru
        _
      %p551 = scmp.le.s32.totalorder 2, %s14
      // Predicated region
      $region61: #{encoder_forward.5} parent=5 // pred_check
        %p552 = pneg %p551
      $region62: #{encoder_forward.5} parent=5 // pred_check_branch
        %554 = sbr.rel (%p552) target = $region64
      $region63: #{encoder_forward.5} parent=5 // pred_region
        %s555 = ssub.s32 %s14, 2
        // Predicated region
        $region65: #{encoder_forward.5} parent=63 // pred_check
          %p556 = pneg %p146
        $region66: #{encoder_forward.5} parent=63 // pred_check_branch
          %558 = sbr.rel (%p556) target = $region68
        $region67: #{encoder_forward.5} parent=63 // pred_region
          %s559 = sand.u32 %s131, 1
          %s560 = scalar_lea.sflag [#allocation8], %s559
          %s561 = sand.u32 %s131, 1
          %s562 = smul.addr %s561, 32
          %s563 = scalar_lea.vmem [#allocation9], %s562
          %565 = dma.done %s560, 512
        $region68: #{encoder_forward.5} parent=63 // pred_fallthru
          _
      $region64: #{encoder_forward.5} parent=5 // pred_fallthru
        _
    $region6: #{encoder_forward.5} parent=1 // loop_footer
      %s18 = sadd.s32 1, %s14
    $region7: #{encoder_forward.5} parent=1 // loop_footer_branch
      %13 = sbr.rel target = $region3
    $region8: #{encoder_forward.5} parent=1 // loop_exit
      _
    %566 = vsyncpa [#allocation7], 1
    %s567 = scalar_lea.sflag [#allocation7], 1
    %568 = vsyncpa %s567, 1
    %569 = vsyncpa [#allocation8], 1
    %s570 = scalar_lea.sflag [#allocation8], 1
    %571 = vsyncpa %s570, 1

// kernel: encoder_forward.4
$region0: #{encoder_forward.4}
  #allocation0 [shape = 'u32[]', space=smem, size = 0x4, offset = 0x4, fixed_abs, tag = 'smem constant byte address 0x4 - core index']
  #allocation1 [shape = 'u32[72,128]{1,0:T(1,128)}', space=vmem, size = 0x9000, scoped, tag = 'internal scratch']
  #allocation2 [shape = 'f32[1,64]{1,0:T(1,128)}', space=vmem, size = 0x200, scoped, tag = 'scratch operand']
  #allocation3 [shape = 'f32[1,64]{1,0:T(1,128)}', space=vmem, size = 0x200, scoped, tag = 'scratch operand']
  #allocation4 [shape = 'f32[1,64]{1,0:T(1,128)}', space=vmem, size = 0x200, scoped, tag = 'scratch operand']
  #allocation5 [shape = 'f32[1,64]{1,0:T(1,128)}', space=vmem, size = 0x200, scoped, tag = 'scratch operand']
  %s0 = inlined_call_operand.vmem [shape: f32[2,16,32], index: 0, kind: input, shape index: {}]
  %s1 = inlined_call_operand.hbm [shape: f32[3,32,64], index: 1, kind: input, shape index: {}]
  %s2 = inlined_call_operand.vmem [shape: f32[1,64], index: 2, kind: input, shape index: {}]
  %s3 = inlined_call_operand.vmem [shape: f32[1,64], index: 3, kind: input, shape index: {}]
  %s4 = inlined_call_operand.vmem [shape: f32[2,16,64], index: 4, kind: output, shape index: {}]
  %s5 = sld [smem:[#allocation0]]
  $region69: #{encoder_forward.4} parent=0
    _
  %s7 = ssub.s32 1, %s5
  %s8 = scalar_select 0, %s7, %s5
  $region1: #{encoder_forward.4} parent=0
    #allocation6 [shape = 'u8[49152]{0}', space=vmem, size = 0xc000, scoped, tag = 'input window, operand 1, single buffered']
    #allocation7 [shape = 's32[2]{0}', space=sflag, size = 0x8, scoped, tag = 'scoped memory for encoder_forward.4']
    %9 = vsyncpa [#allocation7], 0
    loop: start=0, step=1, limit=4
    $region2: #{encoder_forward.4} parent=1 // loop_pre_header
      _
    $region3: #{encoder_forward.4} parent=1 // loop_header
      %s11 = sphi 0, %s15
      %p12 = scmp.ge.s32.totalorder %s11, 4
      %s18 = sphi 0, %s30
      %s19 = sphi 0, %s26
      %s20 = sphi 0, %s18
      %s21 = sphi 0, %s19
      %s22 = sphi 0, %s20
      %s23 = sphi 0, %s21
      %s33 = sphi 0, %s35
      %s36 = sphi 0, %s33
      %s37 = sphi 0, %s36
      %s53 = sphi 0, %s37
      %s57 = sphi 0, %s57
      %s59 = sphi 0, %s57
      %s60 = sphi 0, %s59
      %s74 = sphi 0, %s60
      %s78 = sphi 0, %s78
      %s80 = sphi 0, %s78
      %s81 = sphi 0, %s80
      %s95 = sphi 0, %s81
      %s99 = sphi 0, %s99
      %s101 = sphi 0, %s99
      %s102 = sphi 0, %s101
      %s116 = sphi 0, %s102
      %s124 = sphi 0, %s126
      %s127 = sphi 0, %s124
      %s128 = sphi 0, %s127
      %s144 = sphi 0, %s128
    $region4: #{encoder_forward.4} parent=1 // loop_header_branch
      %14 = sbr.rel (%p12) target = $region8
    $region5: #{encoder_forward.4} parent=1 // loop_body
      %s16 = ssub.s32 %s11, 1
      %s17 = ssub.s32 %s11, 2
      %s24 = sadd.s32 1, %s19
      %p25 = scmp.ge.s32.totalorder %s24, 1
      %s26 = scalar_select %p25, 0, %s24
      %s27 = sadd.s32 1, %s18
      %s28 = scalar_select %p25, %s27, %s18
      %p29 = scmp.ge.s32.totalorder %s28, 2
      %s30 = scalar_select %p29, 0, %s28
      %s31 = ssub.s32 %s19, %s26
      %p32 = scmp.eq.s32.totalorder %s31, 0
      %s34 = sadd.s32 %s33, 1
      %s35 = scalar_select %p32, %s33, %s34
      %p38 = pneg %p32
      %p39 = scmp.eq.s32.totalorder %s11, 1
      %p40 = por %p38, %p39
      %p41 = scmp.ne.s32.totalorder %s33, %s36
      %p42 = scmp.eq.s32.totalorder %s11, 0
      %p43 = por %p41, %p42
      %p44 = scmp.ne.s32.totalorder %s33, %s36
      %p45 = scmp.eq.s32.totalorder %s16, 1
      %p46 = por %p44, %p45
      %p47 = scmp.ne.s32.totalorder %s36, %s37
      %p48 = scmp.eq.s32.totalorder %s16, 0
      %p49 = por %p47, %p48
      %p50 = scmp.ne.s32.totalorder %s36, %s37
      %p51 = scmp.eq.s32.totalorder %s17, 1
      %p52 = por %p50, %p51
      %p54 = scmp.ne.s32.totalorder %s37, %s53
      %p55 = scmp.eq.s32.totalorder %s17, 0
      %p56 = por %p54, %p55
      %s58 = sadd.s32 %s57, 1
      %p61 = scmp.eq.s32.totalorder %s11, 1
      %p62 = scmp.ne.s32.totalorder %s57, %s59
      %p63 = scmp.eq.s32.totalorder %s11, 0
      %p64 = por %p62, %p63
      %p65 = scmp.ne.s32.totalorder %s57, %s59
      %p66 = scmp.eq.s32.totalorder %s16, 1
      %p67 = por %p65, %p66
      %p68 = scmp.ne.s32.totalorder %s59, %s60
      %p69 = scmp.eq.s32.totalorder %s16, 0
      %p70 = por %p68, %p69
      %p71 = scmp.ne.s32.totalorder %s59, %s60
      %p72 = scmp.eq.s32.totalorder %s17, 1
      %p73 = por %p71, %p72
      %p75 = scmp.ne.s32.totalorder %s60, %s74
      %p76 = scmp.eq.s32.totalorder %s17, 0
      %p77 = por %p75, %p76
      %s79 = sadd.s32 %s78, 1
      %p82 = scmp.eq.s32.totalorder %s11, 1
      %p83 = scmp.ne.s32.totalorder %s78, %s80
      %p84 = scmp.eq.s32.totalorder %s11, 0
      %p85 = por %p83, %p84
      %p86 = scmp.ne.s32.totalorder %s78, %s80
      %p87 = scmp.eq.s32.totalorder %s16, 1
      %p88 = por %p86, %p87
      %p89 = scmp.ne.s32.totalorder %s80, %s81
      %p90 = scmp.eq.s32.totalorder %s16, 0
      %p91 = por %p89, %p90
      %p92 = scmp.ne.s32.totalorder %s80, %s81
      %p93 = scmp.eq.s32.totalorder %s17, 1
      %p94 = por %p92, %p93
      %p96 = scmp.ne.s32.totalorder %s81, %s95
      %p97 = scmp.eq.s32.totalorder %s17, 0
      %p98 = por %p96, %p97
      %s100 = sadd.s32 %s99, 1
      %p103 = scmp.eq.s32.totalorder %s11, 1
      %p104 = scmp.ne.s32.totalorder %s99, %s101
      %p105 = scmp.eq.s32.totalorder %s11, 0
      %p106 = por %p104, %p105
      %p107 = scmp.ne.s32.totalorder %s99, %s101
      %p108 = scmp.eq.s32.totalorder %s16, 1
      %p109 = por %p107, %p108
      %p110 = scmp.ne.s32.totalorder %s101, %s102
      %p111 = scmp.eq.s32.totalorder %s16, 0
      %p112 = por %p110, %p111
      %p113 = scmp.ne.s32.totalorder %s101, %s102
      %p114 = scmp.eq.s32.totalorder %s17, 1
      %p115 = por %p113, %p114
      %p117 = scmp.ne.s32.totalorder %s102, %s116
      %p118 = scmp.eq.s32.totalorder %s17, 0
      %p119 = por %p117, %p118
      %s120 = smul.u32 %s18, %s19
      %s121 = smul.u32 %s30, %s26
      %s122 = ssub.s32 %s120, %s121
      %p123 = scmp.eq.s32.totalorder %s122, 0
      %s125 = sadd.s32 %s124, 1
      %s126 = scalar_select %p123, %s124, %s125
      %p129 = pneg %p123
      %p130 = scmp.eq.s32.totalorder %s11, 1
      %p131 = por %p129, %p130
      %p132 = scmp.ne.s32.totalorder %s124, %s127
      %p133 = scmp.eq.s32.totalorder %s11, 0
      %p134 = por %p132, %p133
      %p135 = scmp.ne.s32.totalorder %s124, %s127
      %p136 = scmp.eq.s32.totalorder %s16, 1
      %p137 = por %p135, %p136
      %p138 = scmp.ne.s32.totalorder %s127, %s128
      %p139 = scmp.eq.s32.totalorder %s16, 0
      %p140 = por %p138, %p139
      %p141 = scmp.ne.s32.totalorder %s127, %s128
      %p142 = scmp.eq.s32.totalorder %s17, 1
      %p143 = por %p141, %p142
      %p145 = scmp.ne.s32.totalorder %s128, %s144
      %p146 = scmp.eq.s32.totalorder %s17, 0
      %p147 = por %p145, %p146
      %p148 = scmp.le.s32.totalorder 1, %s11
      %p149 = scmp.lt.s32.totalorder %s11, 3
      %p150 = pnand %p148, %p149
      %p151 = pneg %p150
      // Predicated region
      $region9: #{encoder_forward.4} parent=5 // pred_check
        _
      $region10: #{encoder_forward.4} parent=5 // pred_check_branch
        %153 = sbr.rel (%p150) target = $region12
      $region11: #{encoder_forward.4} parent=5 // pred_region
        %s154 = ssub.s32 %s11, 1
        // Predicated region
        $region13: #{encoder_forward.4} parent=11 // pred_check
          %p155 = pneg %p49
        $region14: #{encoder_forward.4} parent=11 // pred_check_branch
          %157 = sbr.rel (%p155) target = $region16
        $region15: #{encoder_forward.4} parent=11 // pred_region
          %s158 = smul.u32 2, %s21
          %p159 = scmp.lt.s32.totalorder %s158, 1
          %s160 = scalar_select %p159, %s158, 1
          %s161 = smul.addr %s160, 2
          %s162 = smul.addr %s161, 8
          %s163 = scalar_lea.vmem %s0, %s162
          %s164 = smul.u32 2, %s21
        $region16: #{encoder_forward.4} parent=11 // pred_fallthru
          _
        // Predicated region
        $region17: #{encoder_forward.4} parent=11 // pred_check
          %p165 = pneg %p70
        $region18: #{encoder_forward.4} parent=11 // pred_check_branch
          %167 = sbr.rel (%p165) target = $region20
        $region19: #{encoder_forward.4} parent=11 // pred_region
          %169 = vsyncadd [#allocation7], 0
          %s170 = sshll.u32 %s1, 4
          %s171 = int_to_ptr.hbm [resolvable:$true] %s170
          %s172 = sshll.u32 [#allocation6], 4
          %s173 = int_to_ptr.vmem [resolvable:$true] %s172
          %178 = dma.hbm_to_vmem [thread:$0]  %s171, 1536, %s173, [#allocation7], 128, 128, 8
        $region20: #{encoder_forward.4} parent=11 // pred_fallthru
          _
        // Predicated region
        $region21: #{encoder_forward.4} parent=11 // pred_check
          %p179 = pneg %p91
        $region22: #{encoder_forward.4} parent=11 // pred_check_branch
          %181 = sbr.rel (%p179) target = $region24
        $region23: #{encoder_forward.4} parent=11 // pred_region
          _
        $region24: #{encoder_forward.4} parent=11 // pred_fallthru
          _
        // Predicated region
        $region25: #{encoder_forward.4} parent=11 // pred_check
          %p182 = pneg %p112
        $region26: #{encoder_forward.4} parent=11 // pred_check_branch
          %184 = sbr.rel (%p182) target = $region28
        $region27: #{encoder_forward.4} parent=11 // pred_region
          _
        $region28: #{encoder_forward.4} parent=11 // pred_fallthru
          _
      $region12: #{encoder_forward.4} parent=5 // pred_fallthru
        _
      %p185 = scmp.lt.s32.totalorder %s11, 2
      // Predicated region
      $region29: #{encoder_forward.4} parent=5 // pred_check
        %p186 = pneg %p185
      $region30: #{encoder_forward.4} parent=5 // pred_check_branch
        %188 = sbr.rel (%p186) target = $region32
      $region31: #{encoder_forward.4} parent=5 // pred_region
        _
      $region32: #{encoder_forward.4} parent=5 // pred_fallthru
        _
      %p189 = scmp.le.s32.totalorder 1, %s11
      %p190 = scmp.lt.s32.totalorder %s11, 3
      %p191 = pnand %p189, %p190
      %p192 = pneg %p191
      // Predicated region
      $region33: #{encoder_forward.4} parent=5 // pred_check
        _
      $region34: #{encoder_forward.4} parent=5 // pred_check_branch
        %194 = sbr.rel (%p191) target = $region36
      $region35: #{encoder_forward.4} parent=5 // pred_region
        %s195 = ssub.s32 %s11, 1
        // Predicated region
        $region37: #{encoder_forward.4} parent=35 // pred_check
          %p196 = pneg %p70
        $region38: #{encoder_forward.4} parent=35 // pred_check_branch
          %198 = sbr.rel (%p196) target = $region40
        $region39: #{encoder_forward.4} parent=35 // pred_region
          %200 = dma.done [#allocation7], 1536
        $region40: #{encoder_forward.4} parent=35 // pred_fallthru
          _
        %s201 = smul.u32 2, %s21
        %p202 = scmp.lt.s32.totalorder %s201, 1
        %s203 = scalar_select %p202, %s201, 1
        %s204 = smul.addr %s203, 2
        %s205 = smul.addr %s204, 8
        %s206 = scalar_lea.vmem %s0, %s205
        %p207 = pneg %p49
        %p208 = pneg %p46
        %p209 = pneg %p70
        %p210 = pneg %p67
        %p211 = pneg %p91
        %p212 = pneg %p88
        %p213 = pneg %p112
        %p214 = pneg %p109
        %p215 = pneg %p140
        %p216 = pneg %p137
        %s217 = smul.u32 %s20, %s21
        %s218 = smul.u32 2, %s217
        %p219 = scmp.lt.s32.totalorder %s218, 1
        %s220 = scalar_select %p219, %s218, 1
        %s221 = smul.addr %s220, 2
        %s222 = smul.addr %s221, 8
        %s223 = scalar_lea.vmem %s4, %s222
        %s224 = smul.u32 2, %s21
        %p225 = scmp.lt.s32.totalorder %s224, 1
        %s226 = scalar_select %p225, %s224, 1
        %s227 = smul.addr %s226, 2
        %s228 = smul.addr %s227, 8
        %s229 = scalar_lea.vmem %s0, %s228
        %s230 = smul.u32 2, %s21
        %s231 = smul.u32 %s20, %s21
        %s232 = smul.u32 2, %s231
        %p233 = scmp.lt.s32.totalorder %s232, 1
        %s234 = scalar_select %p233, %s232, 1
        %s235 = smul.addr %s234, 2
        %s236 = smul.addr %s235, 8
        %s237 = scalar_lea.vmem %s4, %s236
        %s238 = smul.u32 %s20, %s21
        %s239 = smul.u32 2, %s238
        %v240 = vld [vmem:[%s229] sm:$0xff]
        %v241 = vld [vmem:[%s229 + $0x8] sm:$0xff]
        %v242 = vld [vmem:[%s229 + $0x10] sm:$0xff]
        %v243 = vld [vmem:[%s229 + $0x18] sm:$0xff]
        %v244 = vlaneseq
        %v245 = vshrl.u32 %v244, 7
        %v246 = vadd.s32 %v245, 8
        %vm247 = vcmp.eq.s32.totalorder %v245, 0
        %vm248 = vcmp.eq.s32.totalorder %v246, 0
        %v249 = vrot.slane %v240, 7
        %v250 = vrot.slane %v241, 7
        %v251 = vrot.slane %v242, 7
        %v252 = vrot.slane %v243, 7
        %vm253 = vcmp.lt.s32.totalorder %v245, 1
        %v254 = vsel %vm253, %v251, %v252
        %v255 = vsel %vm253, %v250, %v251
        %v256 = vsel %vm253, %v249, %v250
        %v257 = vsel %vm253, %v252, %v249
        %v258 = vsel %vm247, 1, 0
        %v259 = vsel %vm248, 1, 0
        %vm260 = vcmp.eq.s32.totalorder %v258, 1
        %vm261 = vcmp.eq.s32.totalorder %v259, 1
        %v262 = vsel %vm260, 0.0, %v257
        %v263 = vsel %vm261, 0.0, %v256
        %v264 = vsel %vm260, 0.0, %v255
        %v265 = vsel %vm261, 0.0, %v254
        %vm266 = vcmp.eq.s32.totalorder %v245, 15
        %vm267 = vcmp.eq.s32.totalorder %v246, 15
        %v268 = vrot.slane %v240, 1
        %v269 = vrot.slane %v241, 1
        %v270 = vrot.slane %v242, 1
        %v271 = vrot.slane %v243, 1
        %vm272 = vcmp.lt.s32.totalorder %v245, 7
        %v273 = vsel %vm272, %v270, %v271
        %v274 = vsel %vm272, %v269, %v270
        %v275 = vsel %vm272, %v268, %v269
        %v276 = vsel %vm272, %v271, %v268
        %v277 = vsel %vm266, 1, 0
        %v278 = vsel %vm267, 1, 0
        %vm279 = vcmp.eq.s32.totalorder %v277, 1
        %vm280 = vcmp.eq.s32.totalorder %v278, 1
        %v281 = vsel %vm279, 0.0, %v275
        %v282 = vsel %vm280, 0.0, %v274
        %v283 = vsel %vm279, 0.0, %v273
        %v284 = vsel %vm280, 0.0, %v276
        %v285 = vld [vmem:[#allocation6] sm:$0xff]
        %v286 = vld [vmem:[#allocation6 + $0x8] sm:$0xff]
        %v287 = vld [vmem:[#allocation6 + $0x10] sm:$0xff]
        %v288 = vld [vmem:[#allocation6 + $0x18] sm:$0xff]
        %s289 = scalar_lea.vmem [#allocation6], 32
        %v290 = vld [vmem:[%s289] sm:$0xff]
        %v291 = vld [vmem:[%s289 + $0x8] sm:$0xff]
        %v292 = vld [vmem:[%s289 + $0x10] sm:$0xff]
        %v293 = vld [vmem:[%s289 + $0x18] sm:$0xff]
        %vm294 = vcmask 261120
        %v296 = vsel %vm294, %v240, 0
        %v299 = vsel %vm294, %v241, 0
        %v302 = vsel %vm294, %v242, 0
        %v305 = vsel %vm294, %v243, 0
        %307 = vmatpush.msra.mxu0 0.0
        %308 = vmatpush.msra.mxu0 0.0
        %309 = vmatpush.msra.mxu0 0.0
        %310 = vmatpush.msra.mxu0 0.0
        %311 = vmatpush.msra.mxu0 0.0
        %312 = vmatpush.msra.mxu0 0.0
        %313 = vmatpush.msra.mxu0 0.0
        %314 = vmatpush.msra.mxu0 0.0
        %315 = vmatpush.msra.mxu0 0.0
        %316 = vmatpush.msra.mxu0 0.0
        %317 = vmatpush.msra.mxu0 0.0
        %318 = vmatpush.msra.mxu0 0.0
        %319 = vmatpush.msra.mxu0 %v293
        %320 = vmatpush.msra.mxu0 %v292
        %321 = vmatpush.msra.mxu0 %v291
        %322 = vmatpush.msra.mxu0 %v290
        %323 = vmatmul.f32.gmra.mxu0 %v296
        %v324 = vpop.f32.mrf.mxu0
        %v325 = vadd.f32 0.0, %v324
        %326 = vmatmul.f32.gmra.mxu0 %v299
        %v327 = vpop.f32.mrf.mxu0
        %v328 = vadd.f32 0.0, %v327
        %329 = vmatmul.f32.gmra.mxu0 %v302
        %v330 = vpop.f32.mrf.mxu0
        %v331 = vadd.f32 0.0, %v330
        %332 = vmatmul.f32.gmra.mxu0 %v305
        %v333 = vpop.f32.mrf.mxu0
        %v334 = vadd.f32 0.0, %v333
        %335 = vdwg.mxu0
        %v337 = vsel %vm294, %v262, 0
        %v340 = vsel %vm294, %v263, 0
        %v343 = vsel %vm294, %v264, 0
        %v346 = vsel %vm294, %v265, 0
        %348 = vmatpush.msra.mxu0 0.0
        %349 = vmatpush.msra.mxu0 0.0
        %350 = vmatpush.msra.mxu0 0.0
        %351 = vmatpush.msra.mxu0 0.0
        %352 = vmatpush.msra.mxu0 0.0
        %353 = vmatpush.msra.mxu0 0.0
        %354 = vmatpush.msra.mxu0 0.0
        %355 = vmatpush.msra.mxu0 0.0
        %356 = vmatpush.msra.mxu0 0.0
        %357 = vmatpush.msra.mxu0 0.0
        %358 = vmatpush.msra.mxu0 0.0
        %359 = vmatpush.msra.mxu0 0.0
        %360 = vmatpush.msra.mxu0 %v288
        %361 = vmatpush.msra.mxu0 %v287
        %362 = vmatpush.msra.mxu0 %v286
        %363 = vmatpush.msra.mxu0 %v285
        %364 = vmatmul.f32.gmra.mxu0 %v337
        %v365 = vpop.f32.mrf.mxu0
        %v366 = vadd.f32 %v325, %v365
        %367 = vmatmul.f32.gmra.mxu0 %v340
        %v368 = vpop.f32.mrf.mxu0
        %v369 = vadd.f32 %v328, %v368
        %370 = vmatmul.f32.gmra.mxu0 %v343
        %v371 = vpop.f32.mrf.mxu0
        %v372 = vadd.f32 %v331, %v371
        %373 = vmatmul.f32.gmra.mxu0 %v346
        %v374 = vpop.f32.mrf.mxu0
        %v375 = vadd.f32 %v334, %v374
        %376 = vdwg.mxu0
        %s377 = scalar_lea.vmem [#allocation6], 64
        %v378 = vld [vmem:[%s377] sm:$0xff]
        %v379 = vld [vmem:[%s377 + $0x8] sm:$0xff]
        %v380 = vld [vmem:[%s377 + $0x10] sm:$0xff]
        %v381 = vld [vmem:[%s377 + $0x18] sm:$0xff]
        %v383 = vsel %vm294, %v281, 0
        %v386 = vsel %vm294, %v282, 0
        %v389 = vsel %vm294, %v283, 0
        %v392 = vsel %vm294, %v284, 0
        %394 = vmatpush.msra.mxu0 0.0
        %395 = vmatpush.msra.mxu0 0.0
        %396 = vmatpush.msra.mxu0 0.0
        %397 = vmatpush.msra.mxu0 0.0
        %398 = vmatpush.msra.mxu0 0.0
        %399 = vmatpush.msra.mxu0 0.0
        %400 = vmatpush.msra.mxu0 0.0
        %401 = vmatpush.msra.mxu0 0.0
        %402 = vmatpush.msra.mxu0 0.0
        %403 = vmatpush.msra.mxu0 0.0
        %404 = vmatpush.msra.mxu0 0.0
        %405 = vmatpush.msra.mxu0 0.0
        %406 = vmatpush.msra.mxu0 %v381
        %407 = vmatpush.msra.mxu0 %v380
        %408 = vmatpush.msra.mxu0 %v379
        %409 = vmatpush.msra.mxu0 %v378
        %410 = vmatmul.f32.gmra.mxu0 %v383
        %v411 = vpop.f32.mrf.mxu0
        %v412 = vadd.f32 0.0, %v411
        %413 = vmatmul.f32.gmra.mxu0 %v386
        %v414 = vpop.f32.mrf.mxu0
        %v415 = vadd.f32 0.0, %v414
        %416 = vmatmul.f32.gmra.mxu0 %v389
        %v417 = vpop.f32.mrf.mxu0
        %v418 = vadd.f32 0.0, %v417
        %419 = vmatmul.f32.gmra.mxu0 %v392
        %v420 = vpop.f32.mrf.mxu0
        %v421 = vadd.f32 0.0, %v420
        %422 = vdwg.mxu0
        %v423 = vadd.f32 %v366, %v412
        %v424 = vadd.f32 %v369, %v415
        %v425 = vadd.f32 %v372, %v418
        %v426 = vadd.f32 %v375, %v421
        %p427 = scmp.eq.s32.totalorder %s20, 0
        %p428 = scmp.eq.s32.totalorder %s21, 0
        %p429 = pnand %p427, %p428
        %p430 = pneg %p429
        // Predicated region
        $region41: #{encoder_forward.4} parent=35 // pred_check
          _
        $region42: #{encoder_forward.4} parent=35 // pred_check_branch
          %432 = sbr.rel (%p429) target = $region44
        $region43: #{encoder_forward.4} parent=35 // pred_region
          %vm433 = vcmask 516096
          %434 = vst.msk [vmem:[#allocation2] sm:$0x1] %vm433, 0.0
          %435 = vst.msk [vmem:[#allocation3] sm:$0x1] %vm433, 0.0
        $region44: #{encoder_forward.4} parent=35 // pred_fallthru
          _
        // Predicated region
        $region45: #{encoder_forward.4} parent=35 // pred_check
          %p436 = pneg %p427
        $region46: #{encoder_forward.4} parent=35 // pred_check_branch
          %438 = sbr.rel (%p436) target = $region48
        $region47: #{encoder_forward.4} parent=35 // pred_region
          %v439 = vld [vmem:[#allocation2] sm:$0x1]
          %vm440 = vcmask 523264
          %v441 = vsel %vm440, %v423, 0.0
          %v442 = vsel %vm440, %v424, 0.0
          %v443 = vadd.f32 %v441, %v442
          %v444 = vsel %vm440, %v425, 0.0
          %v445 = vadd.f32 %v443, %v444
          %v446 = vsel %vm440, %v426, 0.0
          %v447 = vadd.f32 %v445, %v446
          %v448 = vrot.slane %v447, 4
          %v449 = vadd.f32 %v447, %v448
          %v450 = vrot.slane %v449, 2
          %v451 = vadd.f32 %v449, %v450
          %v452 = vrot.slane %v451, 1
          %v453 = vadd.f32 %v451, %v452
          %v454 = vadd.f32 %v439, %v453
          %vm455 = vcmask 516096
          %456 = vst.msk [vmem:[#allocation2] sm:$0x1] %vm455, %v454
          %v457 = vld [vmem:[#allocation3] sm:$0x1]
          %v458 = vmul.f32 %v423, %v423
          %v459 = vmul.f32 %v424, %v424
          %v460 = vmul.f32 %v425, %v425
          %v461 = vmul.f32 %v426, %v426
          %v462 = vsel %vm440, %v458, 0.0
          %v463 = vsel %vm440, %v459, 0.0
          %v464 = vadd.f32 %v462, %v463
          %v465 = vsel %vm440, %v460, 0.0
          %v466 = vadd.f32 %v464, %v465
          %v467 = vsel %vm440, %v461, 0.0
          %v468 = vadd.f32 %v466, %v467
          %v469 = vrot.slane %v468, 4
          %v470 = vadd.f32 %v468, %v469
          %v471 = vrot.slane %v470, 2
          %v472 = vadd.f32 %v470, %v471
          %v473 = vrot.slane %v472, 1
          %v474 = vadd.f32 %v472, %v473
          %v475 = vadd.f32 %v457, %v474
          %476 = vst.msk [vmem:[#allocation3] sm:$0x1] %vm455, %v475
        $region48: #{encoder_forward.4} parent=35 // pred_fallthru
          _
        // Predicated region
        $region49: #{encoder_forward.4} parent=35 // pred_check
          _
        $region50: #{encoder_forward.4} parent=35 // pred_check_branch
          %478 = sbr.rel (%p429) target = $region52
        $region51: #{encoder_forward.4} parent=35 // pred_region
          %v479 = vld [vmem:[#allocation2] sm:$0x1]
          %v480 = vmul.f32 %v479, 0.03125
          %v481 = vld [vmem:[#allocation3] sm:$0x1]
          %v482 = vmul.f32 %v481, 0.03125
          %v483 = vmul.f32 %v480, %v480
          %v484 = vsub.f32 %v482, %v483
          %v485 = vmax.f32 %v484, 0.0
          %v486 = vld [vmem:[%s2] sm:$0x1]
          %v487 = vadd.f32 %v485, 1e-05
          %v488 = vrsqrt.pop %v487
          %v489 = vmul.f32 %v488, %v487
          %v490 = vmul.f32 %v489, %v488
          %v491 = vmul.f32 0.5, %v490
          %v492 = vsub.f32 1.5, %v491
          %v493 = vmul.f32 %v488, %v492
          %vm494 = vweird.f32 %v487
          %vm495 = vweird.f32 %v488
          %vm496 = vmor %vm494, %vm495
          %v497 = vsel %vm496, %v488, %v493
          %v498 = vmul.f32 %v486, %v497
          %vm499 = vcmask 516096
          %500 = vst.msk [vmem:[#allocation4] sm:$0x1] %vm499, %v498
          %v501 = vld [vmem:[%s3] sm:$0x1]
          %v502 = vmul.f32 %v480, %v498
          %v503 = vsub.f32 %v501, %v502
          %504 = vst.msk [vmem:[#allocation5] sm:$0x1] %vm499, %v503
        $region52: #{encoder_forward.4} parent=35 // pred_fallthru
          _
        %p505 = scmp.eq.s32.totalorder %s20, 1
        // Predicated region
        $region53: #{encoder_forward.4} parent=35 // pred_check
          %p506 = pneg %p505
        $region54: #{encoder_forward.4} parent=35 // pred_check_branch
          %508 = sbr.rel (%p506) target = $region56
        $region55: #{encoder_forward.4} parent=35 // pred_region
          %v509 = vld [vmem:[#allocation4] sm:$0x1]
          %v511 = vperm.slane %v509, 0
          %v513 = vmul.f32 %v423, %v511
          %v514 = vmul.f32 %v424, %v511
          %v515 = vmul.f32 %v425, %v511
          %v516 = vmul.f32 %v426, %v511
          %v517 = vld [vmem:[#allocation5] sm:$0x1]
          %v519 = vperm.slane %v517, 0
          %v521 = vadd.f32 %v513, %v519
          %v522 = vadd.f32 %v514, %v519
          %v523 = vadd.f32 %v515, %v519
          %v524 = vadd.f32 %v516, %v519
          %v525 = vmax.f32 %v521, 0.0
          %v526 = vmax.f32 %v522, 0.0
          %v527 = vmax.f32 %v523, 0.0
          %v528 = vmax.f32 %v524, 0.0
          %vm529 = vcmask 523264
          %530 = vst.msk [vmem:[%s237] sm:$0xff] %vm529, %v525
          %531 = vst.msk [vmem:[%s237 + $0x8] sm:$0xff] %vm529, %v526
          %532 = vst.msk [vmem:[%s237 + $0x10] sm:$0xff] %vm529, %v527
          %533 = vst.msk [vmem:[%s237 + $0x18] sm:$0xff] %vm529, %v528
        $region56: #{encoder_forward.4} parent=35 // pred_fallthru
          _
        %s534 = smul.u32 %s20, %s21
        %s535 = smul.u32 2, %s534
        %p536 = scmp.lt.s32.totalorder %s535, 1
        %s537 = scalar_select %p536, %s535, 1
        %s538 = smul.addr %s537, 2
        %s539 = smul.addr %s538, 8
        %s540 = scalar_lea.vmem %s4, %s539
        // Predicated region
        $region57: #{encoder_forward.4} parent=35 // pred_check
          %p541 = pneg %p137
        $region58: #{encoder_forward.4} parent=35 // pred_check_branch
          %543 = sbr.rel (%p541) target = $region60
        $region59: #{encoder_forward.4} parent=35 // pred_region
          %s544 = smul.u32 %s20, %s21
          %s545 = smul.u32 2, %s544
        $region60: #{encoder_forward.4} parent=35 // pred_fallthru
          _
      $region36: #{encoder_forward.4} parent=5 // pred_fallthru
        _
      %p546 = scmp.le.s32.totalorder 2, %s11
      // Predicated region
      $region61: #{encoder_forward.4} parent=5 // pred_check
        %p547 = pneg %p546
      $region62: #{encoder_forward.4} parent=5 // pred_check_branch
        %549 = sbr.rel (%p547) target = $region64
      $region63: #{encoder_forward.4} parent=5 // pred_region
        %s550 = ssub.s32 %s11, 2
        // Predicated region
        $region65: #{encoder_forward.4} parent=63 // pred_check
          %p551 = pneg %p143
        $region66: #{encoder_forward.4} parent=63 // pred_check_branch
          %553 = sbr.rel (%p551) target = $region68
        $region67: #{encoder_forward.4} parent=63 // pred_region
          %s554 = smul.u32 %s22, %s23
          %s555 = smul.u32 2, %s554
          %p556 = scmp.lt.s32.totalorder %s555, 1
          %s557 = scalar_select %p556, %s555, 1
          %s558 = smul.addr %s557, 2
          %s559 = smul.addr %s558, 8
          %s560 = scalar_lea.vmem %s4, %s559
        $region68: #{encoder_forward.4} parent=63 // pred_fallthru
          _
      $region64: #{encoder_forward.4} parent=5 // pred_fallthru
        _
    $region6: #{encoder_forward.4} parent=1 // loop_footer
      %s15 = sadd.s32 1, %s11
    $region7: #{encoder_forward.4} parent=1 // loop_footer_branch
      %10 = sbr.rel target = $region3
    $region8: #{encoder_forward.4} parent=1 // loop_exit
      _
    %561 = vsyncpa [#allocation7], 1
    %s562 = scalar_lea.sflag [#allocation7], 1
    %563 = vsyncpa %s562, 1

// kernel: encoder_forward.3
$region0: #{encoder_forward.3}
  #allocation0 [shape = 'u32[]', space=smem, size = 0x4, offset = 0x4, fixed_abs, tag = 'smem constant byte address 0x4 - core index']
  #allocation1 [shape = 'u32[72,128]{1,0:T(1,128)}', space=vmem, size = 0x9000, scoped, tag = 'internal scratch']
  #allocation2 [shape = 'f32[1,32]{1,0:T(1,128)}', space=vmem, size = 0x200, scoped, tag = 'scratch operand']
  #allocation3 [shape = 'f32[1,32]{1,0:T(1,128)}', space=vmem, size = 0x200, scoped, tag = 'scratch operand']
  #allocation4 [shape = 'f32[1,32]{1,0:T(1,128)}', space=vmem, size = 0x200, scoped, tag = 'scratch operand']
  #allocation5 [shape = 'f32[1,32]{1,0:T(1,128)}', space=vmem, size = 0x200, scoped, tag = 'scratch operand']
  %s0 = inlined_call_operand.vmem [shape: f32[2,16,4], index: 0, kind: input, shape index: {}]
  %s1 = inlined_call_operand.vmem [shape: f32[3,4,32], index: 1, kind: input, shape index: {}]
  %s2 = inlined_call_operand.vmem [shape: f32[1,32], index: 2, kind: input, shape index: {}]
  %s3 = inlined_call_operand.vmem [shape: f32[1,32], index: 3, kind: input, shape index: {}]
  %s4 = inlined_call_operand.vmem [shape: f32[2,16,32], index: 4, kind: output, shape index: {}]
  %s5 = sld [smem:[#allocation0]]
  $region65: #{encoder_forward.3} parent=0
    _
  %s7 = ssub.s32 1, %s5
  %s8 = scalar_select 0, %s7, %s5
  loop: start=0, step=1, limit=4
  $region2: #{encoder_forward.3} parent=0 // loop_pre_header
    _
  $region3: #{encoder_forward.3} parent=0 // loop_header
    %s10 = sphi 0, %s14
    %p11 = scmp.ge.s32.totalorder %s10, 4
    %s17 = sphi 0, %s29
    %s18 = sphi 0, %s25
    %s19 = sphi 0, %s17
    %s20 = sphi 0, %s18
    %s21 = sphi 0, %s19
    %s22 = sphi 0, %s20
    %s32 = sphi 0, %s34
    %s35 = sphi 0, %s32
    %s36 = sphi 0, %s35
    %s52 = sphi 0, %s36
    %s56 = sphi 0, %s56
    %s58 = sphi 0, %s56
    %s59 = sphi 0, %s58
    %s73 = sphi 0, %s59
    %s77 = sphi 0, %s77
    %s79 = sphi 0, %s77
    %s80 = sphi 0, %s79
    %s94 = sphi 0, %s80
    %s98 = sphi 0, %s98
    %s100 = sphi 0, %s98
    %s101 = sphi 0, %s100
    %s115 = sphi 0, %s101
    %s123 = sphi 0, %s125
    %s126 = sphi 0, %s123
    %s127 = sphi 0, %s126
    %s143 = sphi 0, %s127
  $region4: #{encoder_forward.3} parent=0 // loop_header_branch
    %13 = sbr.rel (%p11) target = $region8
  $region5: #{encoder_forward.3} parent=0 // loop_body
    %s15 = ssub.s32 %s10, 1
    %s16 = ssub.s32 %s10, 2
    %s23 = sadd.s32 1, %s18
    %p24 = scmp.ge.s32.totalorder %s23, 1
    %s25 = scalar_select %p24, 0, %s23
    %s26 = sadd.s32 1, %s17
    %s27 = scalar_select %p24, %s26, %s17
    %p28 = scmp.ge.s32.totalorder %s27, 2
    %s29 = scalar_select %p28, 0, %s27
    %s30 = ssub.s32 %s18, %s25
    %p31 = scmp.eq.s32.totalorder %s30, 0
    %s33 = sadd.s32 %s32, 1
    %s34 = scalar_select %p31, %s32, %s33
    %p37 = pneg %p31
    %p38 = scmp.eq.s32.totalorder %s10, 1
    %p39 = por %p37, %p38
    %p40 = scmp.ne.s32.totalorder %s32, %s35
    %p41 = scmp.eq.s32.totalorder %s10, 0
    %p42 = por %p40, %p41
    %p43 = scmp.ne.s32.totalorder %s32, %s35
    %p44 = scmp.eq.s32.totalorder %s15, 1
    %p45 = por %p43, %p44
    %p46 = scmp.ne.s32.totalorder %s35, %s36
    %p47 = scmp.eq.s32.totalorder %s15, 0
    %p48 = por %p46, %p47
    %p49 = scmp.ne.s32.totalorder %s35, %s36
    %p50 = scmp.eq.s32.totalorder %s16, 1
    %p51 = por %p49, %p50
    %p53 = scmp.ne.s32.totalorder %s36, %s52
    %p54 = scmp.eq.s32.totalorder %s16, 0
    %p55 = por %p53, %p54
    %s57 = sadd.s32 %s56, 1
    %p60 = scmp.eq.s32.totalorder %s10, 1
    %p61 = scmp.ne.s32.totalorder %s56, %s58
    %p62 = scmp.eq.s32.totalorder %s10, 0
    %p63 = por %p61, %p62
    %p64 = scmp.ne.s32.totalorder %s56, %s58
    %p65 = scmp.eq.s32.totalorder %s15, 1
    %p66 = por %p64, %p65
    %p67 = scmp.ne.s32.totalorder %s58, %s59
    %p68 = scmp.eq.s32.totalorder %s15, 0
    %p69 = por %p67, %p68
    %p70 = scmp.ne.s32.totalorder %s58, %s59
    %p71 = scmp.eq.s32.totalorder %s16, 1
    %p72 = por %p70, %p71
    %p74 = scmp.ne.s32.totalorder %s59, %s73
    %p75 = scmp.eq.s32.totalorder %s16, 0
    %p76 = por %p74, %p75
    %s78 = sadd.s32 %s77, 1
    %p81 = scmp.eq.s32.totalorder %s10, 1
    %p82 = scmp.ne.s32.totalorder %s77, %s79
    %p83 = scmp.eq.s32.totalorder %s10, 0
    %p84 = por %p82, %p83
    %p85 = scmp.ne.s32.totalorder %s77, %s79
    %p86 = scmp.eq.s32.totalorder %s15, 1
    %p87 = por %p85, %p86
    %p88 = scmp.ne.s32.totalorder %s79, %s80
    %p89 = scmp.eq.s32.totalorder %s15, 0
    %p90 = por %p88, %p89
    %p91 = scmp.ne.s32.totalorder %s79, %s80
    %p92 = scmp.eq.s32.totalorder %s16, 1
    %p93 = por %p91, %p92
    %p95 = scmp.ne.s32.totalorder %s80, %s94
    %p96 = scmp.eq.s32.totalorder %s16, 0
    %p97 = por %p95, %p96
    %s99 = sadd.s32 %s98, 1
    %p102 = scmp.eq.s32.totalorder %s10, 1
    %p103 = scmp.ne.s32.totalorder %s98, %s100
    %p104 = scmp.eq.s32.totalorder %s10, 0
    %p105 = por %p103, %p104
    %p106 = scmp.ne.s32.totalorder %s98, %s100
    %p107 = scmp.eq.s32.totalorder %s15, 1
    %p108 = por %p106, %p107
    %p109 = scmp.ne.s32.totalorder %s100, %s101
    %p110 = scmp.eq.s32.totalorder %s15, 0
    %p111 = por %p109, %p110
    %p112 = scmp.ne.s32.totalorder %s100, %s101
    %p113 = scmp.eq.s32.totalorder %s16, 1
    %p114 = por %p112, %p113
    %p116 = scmp.ne.s32.totalorder %s101, %s115
    %p117 = scmp.eq.s32.totalorder %s16, 0
    %p118 = por %p116, %p117
    %s119 = smul.u32 %s17, %s18
    %s120 = smul.u32 %s29, %s25
    %s121 = ssub.s32 %s119, %s120
    %p122 = scmp.eq.s32.totalorder %s121, 0
    %s124 = sadd.s32 %s123, 1
    %s125 = scalar_select %p122, %s123, %s124
    %p128 = pneg %p122
    %p129 = scmp.eq.s32.totalorder %s10, 1
    %p130 = por %p128, %p129
    %p131 = scmp.ne.s32.totalorder %s123, %s126
    %p132 = scmp.eq.s32.totalorder %s10, 0
    %p133 = por %p131, %p132
    %p134 = scmp.ne.s32.totalorder %s123, %s126
    %p135 = scmp.eq.s32.totalorder %s15, 1
    %p136 = por %p134, %p135
    %p137 = scmp.ne.s32.totalorder %s126, %s127
    %p138 = scmp.eq.s32.totalorder %s15, 0
    %p139 = por %p137, %p138
    %p140 = scmp.ne.s32.totalorder %s126, %s127
    %p141 = scmp.eq.s32.totalorder %s16, 1
    %p142 = por %p140, %p141
    %p144 = scmp.ne.s32.totalorder %s127, %s143
    %p145 = scmp.eq.s32.totalorder %s16, 0
    %p146 = por %p144, %p145
    %p147 = scmp.le.s32.totalorder 1, %s10
    %p148 = scmp.lt.s32.totalorder %s10, 3
    %p149 = pnand %p147, %p148
    %p150 = pneg %p149
    // Predicated region
    $region9: #{encoder_forward.3} parent=5 // pred_check
      _
    $region10: #{encoder_forward.3} parent=5 // pred_check_branch
      %152 = sbr.rel (%p149) target = $region12
    $region11: #{encoder_forward.3} parent=5 // pred_region
      %s153 = ssub.s32 %s10, 1
      // Predicated region
      $region13: #{encoder_forward.3} parent=11 // pred_check
        %p154 = pneg %p48
      $region14: #{encoder_forward.3} parent=11 // pred_check_branch
        %156 = sbr.rel (%p154) target = $region16
      $region15: #{encoder_forward.3} parent=11 // pred_region
        %s157 = smul.u32 2, %s20
        %p158 = scmp.lt.s32.totalorder %s157, 1
        %s159 = scalar_select %p158, %s157, 1
        %s160 = smul.addr %s159, 2
        %s161 = smul.addr %s160, 8
        %s162 = scalar_lea.vmem %s0, %s161
        %s163 = smul.u32 2, %s20
      $region16: #{encoder_forward.3} parent=11 // pred_fallthru
        _
      // Predicated region
      $region17: #{encoder_forward.3} parent=11 // pred_check
        %p164 = pneg %p69
      $region18: #{encoder_forward.3} parent=11 // pred_check_branch
        %166 = sbr.rel (%p164) target = $region20
      $region19: #{encoder_forward.3} parent=11 // pred_region
        _
      $region20: #{encoder_forward.3} parent=11 // pred_fallthru
        _
      // Predicated region
      $region21: #{encoder_forward.3} parent=11 // pred_check
        %p167 = pneg %p90
      $region22: #{encoder_forward.3} parent=11 // pred_check_branch
        %169 = sbr.rel (%p167) target = $region24
      $region23: #{encoder_forward.3} parent=11 // pred_region
        _
      $region24: #{encoder_forward.3} parent=11 // pred_fallthru
        _
      // Predicated region
      $region25: #{encoder_forward.3} parent=11 // pred_check
        %p170 = pneg %p111
      $region26: #{encoder_forward.3} parent=11 // pred_check_branch
        %172 = sbr.rel (%p170) target = $region28
      $region27: #{encoder_forward.3} parent=11 // pred_region
        _
      $region28: #{encoder_forward.3} parent=11 // pred_fallthru
        _
    $region12: #{encoder_forward.3} parent=5 // pred_fallthru
      _
    %p173 = scmp.lt.s32.totalorder %s10, 2
    // Predicated region
    $region29: #{encoder_forward.3} parent=5 // pred_check
      %p174 = pneg %p173
    $region30: #{encoder_forward.3} parent=5 // pred_check_branch
      %176 = sbr.rel (%p174) target = $region32
    $region31: #{encoder_forward.3} parent=5 // pred_region
      _
    $region32: #{encoder_forward.3} parent=5 // pred_fallthru
      _
    %p177 = scmp.le.s32.totalorder 1, %s10
    %p178 = scmp.lt.s32.totalorder %s10, 3
    %p179 = pnand %p177, %p178
    %p180 = pneg %p179
    // Predicated region
    $region33: #{encoder_forward.3} parent=5 // pred_check
      _
    $region34: #{encoder_forward.3} parent=5 // pred_check_branch
      %182 = sbr.rel (%p179) target = $region36
    $region35: #{encoder_forward.3} parent=5 // pred_region
      %s183 = ssub.s32 %s10, 1
      %s184 = smul.u32 2, %s20
      %p185 = scmp.lt.s32.totalorder %s184, 1
      %s186 = scalar_select %p185, %s184, 1
      %s187 = smul.addr %s186, 2
      %s188 = smul.addr %s187, 8
      %s189 = scalar_lea.vmem %s0, %s188
      %p190 = pneg %p48
      %p191 = pneg %p45
      %p192 = pneg %p69
      %p193 = pneg %p66
      %p194 = pneg %p90
      %p195 = pneg %p87
      %p196 = pneg %p111
      %p197 = pneg %p108
      %p198 = pneg %p139
      %p199 = pneg %p136
      %s200 = smul.u32 %s19, %s20
      %s201 = smul.u32 2, %s200
      %p202 = scmp.lt.s32.totalorder %s201, 1
      %s203 = scalar_select %p202, %s201, 1
      %s204 = smul.addr %s203, 2
      %s205 = smul.addr %s204, 8
      %s206 = scalar_lea.vmem %s4, %s205
      %s207 = smul.u32 2, %s20
      %p208 = scmp.lt.s32.totalorder %s207, 1
      %s209 = scalar_select %p208, %s207, 1
      %s210 = smul.addr %s209, 2
      %s211 = smul.addr %s210, 8
      %s212 = scalar_lea.vmem %s0, %s211
      %s213 = smul.u32 2, %s20
      %s214 = smul.u32 %s19, %s20
      %s215 = smul.u32 2, %s214
      %p216 = scmp.lt.s32.totalorder %s215, 1
      %s217 = scalar_select %p216, %s215, 1
      %s218 = smul.addr %s217, 2
      %s219 = smul.addr %s218, 8
      %s220 = scalar_lea.vmem %s4, %s219
      %s221 = smul.u32 %s19, %s20
      %s222 = smul.u32 2, %s221
      %v223 = vld [vmem:[%s212] sm:$0xff]
      %v224 = vld [vmem:[%s212 + $0x8] sm:$0xff]
      %v225 = vld [vmem:[%s212 + $0x10] sm:$0xff]
      %v226 = vld [vmem:[%s212 + $0x18] sm:$0xff]
      %v227 = vlaneseq
      %v228 = vshrl.u32 %v227, 7
      %v229 = vadd.s32 %v228, 8
      %vm230 = vcmp.eq.s32.totalorder %v228, 0
      %vm231 = vcmp.eq.s32.totalorder %v229, 0
      %v232 = vrot.slane %v223, 7
      %v233 = vrot.slane %v224, 7
      %v234 = vrot.slane %v225, 7
      %v235 = vrot.slane %v226, 7
      %vm236 = vcmp.lt.s32.totalorder %v228, 1
      %v237 = vsel %vm236, %v234, %v235
      %v238 = vsel %vm236, %v233, %v234
      %v239 = vsel %vm236, %v232, %v233
      %v240 = vsel %vm236, %v235, %v232
      %v241 = vsel %vm230, 1, 0
      %v242 = vsel %vm231, 1, 0
      %vm243 = vcmp.eq.s32.totalorder %v241, 1
      %vm244 = vcmp.eq.s32.totalorder %v242, 1
      %v245 = vsel %vm243, 0.0, %v240
      %v246 = vsel %vm244, 0.0, %v239
      %v247 = vsel %vm243, 0.0, %v238
      %v248 = vsel %vm244, 0.0, %v237
      %vm249 = vcmp.eq.s32.totalorder %v228, 15
      %vm250 = vcmp.eq.s32.totalorder %v229, 15
      %v251 = vrot.slane %v223, 1
      %v252 = vrot.slane %v224, 1
      %v253 = vrot.slane %v225, 1
      %v254 = vrot.slane %v226, 1
      %vm255 = vcmp.lt.s32.totalorder %v228, 7
      %v256 = vsel %vm255, %v253, %v254
      %v257 = vsel %vm255, %v252, %v253
      %v258 = vsel %vm255, %v251, %v252
      %v259 = vsel %vm255, %v254, %v251
      %v260 = vsel %vm249, 1, 0
      %v261 = vsel %vm250, 1, 0
      %vm262 = vcmp.eq.s32.totalorder %v260, 1
      %vm263 = vcmp.eq.s32.totalorder %v261, 1
      %v264 = vsel %vm262, 0.0, %v258
      %v265 = vsel %vm263, 0.0, %v257
      %v266 = vsel %vm262, 0.0, %v256
      %v267 = vsel %vm263, 0.0, %v259
      %v268 = vld [vmem:[%s1] sm:$0xf]
      %s269 = scalar_lea.vmem %s1, 4
      %v270 = vld [vmem:[%s269] sm:$0xf]
      %vm271 = vcmask 31744
      %v273 = vsel %vm271, %v223, 0
      %v276 = vsel %vm271, %v224, 0
      %v279 = vsel %vm271, %v225, 0
      %v282 = vsel %vm271, %v226, 0
      %vm284 = vcmask 1043456
      %v286 = vsel %vm284, %v270, 0
      %288 = vmatpush.msra.mxu0 0.0
      %289 = vmatpush.msra.mxu0 0.0
      %290 = vmatpush.msra.mxu0 0.0
      %291 = vmatpush.msra.mxu0 0.0
      %292 = vmatpush.msra.mxu0 0.0
      %293 = vmatpush.msra.mxu0 0.0
      %294 = vmatpush.msra.mxu0 0.0
      %295 = vmatpush.msra.mxu0 0.0
      %296 = vmatpush.msra.mxu0 0.0
      %297 = vmatpush.msra.mxu0 0.0
      %298 = vmatpush.msra.mxu0 0.0
      %299 = vmatpush.msra.mxu0 0.0
      %300 = vmatpush.msra.mxu0 0.0
      %301 = vmatpush.msra.mxu0 0.0
      %302 = vmatpush.msra.mxu0 0.0
      %303 = vmatpush.msra.mxu0 %v286
      %304 = vmatmul.f32.gmra.mxu0 %v273
      %v305 = vpop.f32.mrf.mxu0
      %v306 = vadd.f32 0.0, %v305
      %307 = vmatmul.f32.gmra.mxu0 %v276
      %v308 = vpop.f32.mrf.mxu0
      %v309 = vadd.f32 0.0, %v308
      %310 = vmatmul.f32.gmra.mxu0 %v279
      %v311 = vpop.f32.mrf.mxu0
      %v312 = vadd.f32 0.0, %v311
      %313 = vmatmul.f32.gmra.mxu0 %v282
      %v314 = vpop.f32.mrf.mxu0
      %v315 = vadd.f32 0.0, %v314
      %316 = vdwg.mxu0
      %v318 = vsel %vm271, %v245, 0
      %v321 = vsel %vm271, %v246, 0
      %v324 = vsel %vm271, %v247, 0
      %v327 = vsel %vm271, %v248, 0
      %v330 = vsel %vm284, %v268, 0
      %332 = vmatpush.msra.mxu0 0.0
      %333 = vmatpush.msra.mxu0 0.0
      %334 = vmatpush.msra.mxu0 0.0
      %335 = vmatpush.msra.mxu0 0.0
      %336 = vmatpush.msra.mxu0 0.0
      %337 = vmatpush.msra.mxu0 0.0
      %338 = vmatpush.msra.mxu0 0.0
      %339 = vmatpush.msra.mxu0 0.0
      %340 = vmatpush.msra.mxu0 0.0
      %341 = vmatpush.msra.mxu0 0.0
      %342 = vmatpush.msra.mxu0 0.0
      %343 = vmatpush.msra.mxu0 0.0
      %344 = vmatpush.msra.mxu0 0.0
      %345 = vmatpush.msra.mxu0 0.0
      %346 = vmatpush.msra.mxu0 0.0
      %347 = vmatpush.msra.mxu0 %v330
      %348 = vmatmul.f32.gmra.mxu0 %v318
      %v349 = vpop.f32.mrf.mxu0
      %v350 = vadd.f32 %v306, %v349
      %351 = vmatmul.f32.gmra.mxu0 %v321
      %v352 = vpop.f32.mrf.mxu0
      %v353 = vadd.f32 %v309, %v352
      %354 = vmatmul.f32.gmra.mxu0 %v324
      %v355 = vpop.f32.mrf.mxu0
      %v356 = vadd.f32 %v312, %v355
      %357 = vmatmul.f32.gmra.mxu0 %v327
      %v358 = vpop.f32.mrf.mxu0
      %v359 = vadd.f32 %v315, %v358
      %360 = vdwg.mxu0
      %s361 = scalar_lea.vmem %s1, 8
      %v362 = vld [vmem:[%s361] sm:$0xf]
      %v364 = vsel %vm271, %v264, 0
      %v367 = vsel %vm271, %v265, 0
      %v370 = vsel %vm271, %v266, 0
      %v373 = vsel %vm271, %v267, 0
      %v376 = vsel %vm284, %v362, 0
      %378 = vmatpush.msra.mxu0 0.0
      %379 = vmatpush.msra.mxu0 0.0
      %380 = vmatpush.msra.mxu0 0.0
      %381 = vmatpush.msra.mxu0 0.0
      %382 = vmatpush.msra.mxu0 0.0
      %383 = vmatpush.msra.mxu0 0.0
      %384 = vmatpush.msra.mxu0 0.0
      %385 = vmatpush.msra.mxu0 0.0
      %386 = vmatpush.msra.mxu0 0.0
      %387 = vmatpush.msra.mxu0 0.0
      %388 = vmatpush.msra.mxu0 0.0
      %389 = vmatpush.msra.mxu0 0.0
      %390 = vmatpush.msra.mxu0 0.0
      %391 = vmatpush.msra.mxu0 0.0
      %392 = vmatpush.msra.mxu0 0.0
      %393 = vmatpush.msra.mxu0 %v376
      %394 = vmatmul.f32.gmra.mxu0 %v364
      %v395 = vpop.f32.mrf.mxu0
      %v396 = vadd.f32 0.0, %v395
      %397 = vmatmul.f32.gmra.mxu0 %v367
      %v398 = vpop.f32.mrf.mxu0
      %v399 = vadd.f32 0.0, %v398
      %400 = vmatmul.f32.gmra.mxu0 %v370
      %v401 = vpop.f32.mrf.mxu0
      %v402 = vadd.f32 0.0, %v401
      %403 = vmatmul.f32.gmra.mxu0 %v373
      %v404 = vpop.f32.mrf.mxu0
      %v405 = vadd.f32 0.0, %v404
      %406 = vdwg.mxu0
      %v407 = vadd.f32 %v350, %v396
      %v408 = vadd.f32 %v353, %v399
      %v409 = vadd.f32 %v356, %v402
      %v410 = vadd.f32 %v359, %v405
      %p411 = scmp.eq.s32.totalorder %s19, 0
      %p412 = scmp.eq.s32.totalorder %s20, 0
      %p413 = pnand %p411, %p412
      %p414 = pneg %p413
      // Predicated region
      $region37: #{encoder_forward.3} parent=35 // pred_check
        _
      $region38: #{encoder_forward.3} parent=35 // pred_check_branch
        %416 = sbr.rel (%p413) target = $region40
      $region39: #{encoder_forward.3} parent=35 // pred_region
        %vm417 = vcmask 253952
        %418 = vst.msk [vmem:[#allocation2] sm:$0x1] %vm417, 0.0
        %419 = vst.msk [vmem:[#allocation3] sm:$0x1] %vm417, 0.0
      $region40: #{encoder_forward.3} parent=35 // pred_fallthru
        _
      // Predicated region
      $region41: #{encoder_forward.3} parent=35 // pred_check
        %p420 = pneg %p411
      $region42: #{encoder_forward.3} parent=35 // pred_check_branch
        %422 = sbr.rel (%p420) target = $region44
      $region43: #{encoder_forward.3} parent=35 // pred_region
        %v423 = vld [vmem:[#allocation2] sm:$0x1]
        %vm424 = vcmask 261120
        %v425 = vsel %vm424, %v407, 0.0
        %v426 = vsel %vm424, %v408, 0.0
        %v427 = vadd.f32 %v425, %v426
        %v428 = vsel %vm424, %v409, 0.0
        %v429 = vadd.f32 %v427, %v428
        %v430 = vsel %vm424, %v410, 0.0
        %v431 = vadd.f32 %v429, %v430
        %v432 = vrot.slane %v431, 4
        %v433 = vadd.f32 %v431, %v432
        %v434 = vrot.slane %v433, 2
        %v435 = vadd.f32 %v433, %v434
        %v436 = vrot.slane %v435, 1
        %v437 = vadd.f32 %v435, %v436
        %v438 = vadd.f32 %v423, %v437
        %vm439 = vcmask 253952
        %440 = vst.msk [vmem:[#allocation2] sm:$0x1] %vm439, %v438
        %v441 = vld [vmem:[#allocation3] sm:$0x1]
        %v442 = vmul.f32 %v407, %v407
        %v443 = vmul.f32 %v408, %v408
        %v444 = vmul.f32 %v409, %v409
        %v445 = vmul.f32 %v410, %v410
        %v446 = vsel %vm424, %v442, 0.0
        %v447 = vsel %vm424, %v443, 0.0
        %v448 = vadd.f32 %v446, %v447
        %v449 = vsel %vm424, %v444, 0.0
        %v450 = vadd.f32 %v448, %v449
        %v451 = vsel %vm424, %v445, 0.0
        %v452 = vadd.f32 %v450, %v451
        %v453 = vrot.slane %v452, 4
        %v454 = vadd.f32 %v452, %v453
        %v455 = vrot.slane %v454, 2
        %v456 = vadd.f32 %v454, %v455
        %v457 = vrot.slane %v456, 1
        %v458 = vadd.f32 %v456, %v457
        %v459 = vadd.f32 %v441, %v458
        %460 = vst.msk [vmem:[#allocation3] sm:$0x1] %vm439, %v459
      $region44: #{encoder_forward.3} parent=35 // pred_fallthru
        _
      // Predicated region
      $region45: #{encoder_forward.3} parent=35 // pred_check
        _
      $region46: #{encoder_forward.3} parent=35 // pred_check_branch
        %462 = sbr.rel (%p413) target = $region48
      $region47: #{encoder_forward.3} parent=35 // pred_region
        %v463 = vld [vmem:[#allocation2] sm:$0x1]
        %v464 = vmul.f32 %v463, 0.03125
        %v465 = vld [vmem:[#allocation3] sm:$0x1]
        %v466 = vmul.f32 %v465, 0.03125
        %v467 = vmul.f32 %v464, %v464
        %v468 = vsub.f32 %v466, %v467
        %v469 = vmax.f32 %v468, 0.0
        %v470 = vld [vmem:[%s2] sm:$0x1]
        %v471 = vadd.f32 %v469, 1e-05
        %v472 = vrsqrt.pop %v471
        %v473 = vmul.f32 %v472, %v471
        %v474 = vmul.f32 %v473, %v472
        %v475 = vmul.f32 0.5, %v474
        %v476 = vsub.f32 1.5, %v475
        %v477 = vmul.f32 %v472, %v476
        %vm478 = vweird.f32 %v471
        %vm479 = vweird.f32 %v472
        %vm480 = vmor %vm478, %vm479
        %v481 = vsel %vm480, %v472, %v477
        %v482 = vmul.f32 %v470, %v481
        %vm483 = vcmask 253952
        %484 = vst.msk [vmem:[#allocation4] sm:$0x1] %vm483, %v482
        %v485 = vld [vmem:[%s3] sm:$0x1]
        %v486 = vmul.f32 %v464, %v482
        %v487 = vsub.f32 %v485, %v486
        %488 = vst.msk [vmem:[#allocation5] sm:$0x1] %vm483, %v487
      $region48: #{encoder_forward.3} parent=35 // pred_fallthru
        _
      %p489 = scmp.eq.s32.totalorder %s19, 1
      // Predicated region
      $region49: #{encoder_forward.3} parent=35 // pred_check
        %p490 = pneg %p489
      $region50: #{encoder_forward.3} parent=35 // pred_check_branch
        %492 = sbr.rel (%p490) target = $region52
      $region51: #{encoder_forward.3} parent=35 // pred_region
        %v493 = vld [vmem:[#allocation4] sm:$0x1]
        %v495 = vperm.slane %v493, 0
        %v497 = vmul.f32 %v407, %v495
        %v498 = vmul.f32 %v408, %v495
        %v499 = vmul.f32 %v409, %v495
        %v500 = vmul.f32 %v410, %v495
        %v501 = vld [vmem:[#allocation5] sm:$0x1]
        %v503 = vperm.slane %v501, 0
        %v505 = vadd.f32 %v497, %v503
        %v506 = vadd.f32 %v498, %v503
        %v507 = vadd.f32 %v499, %v503
        %v508 = vadd.f32 %v500, %v503
        %v509 = vmax.f32 %v505, 0.0
        %v510 = vmax.f32 %v506, 0.0
        %v511 = vmax.f32 %v507, 0.0
        %v512 = vmax.f32 %v508, 0.0
        %vm513 = vcmask 261120
        %514 = vst.msk [vmem:[%s220] sm:$0xff] %vm513, %v509
        %515 = vst.msk [vmem:[%s220 + $0x8] sm:$0xff] %vm513, %v510
        %516 = vst.msk [vmem:[%s220 + $0x10] sm:$0xff] %vm513, %v511
        %517 = vst.msk [vmem:[%s220 + $0x18] sm:$0xff] %vm513, %v512
      $region52: #{encoder_forward.3} parent=35 // pred_fallthru
        _
      %s518 = smul.u32 %s19, %s20
      %s519 = smul.u32 2, %s518
      %p520 = scmp.lt.s32.totalorder %s519, 1
      %s521 = scalar_select %p520, %s519, 1
      %s522 = smul.addr %s521, 2
      %s523 = smul.addr %s522, 8
      %s524 = scalar_lea.vmem %s4, %s523
      // Predicated region
      $region53: #{encoder_forward.3} parent=35 // pred_check
        %p525 = pneg %p136
      $region54: #{encoder_forward.3} parent=35 // pred_check_branch
        %527 = sbr.rel (%p525) target = $region56
      $region55: #{encoder_forward.3} parent=35 // pred_region
        %s528 = smul.u32 %s19, %s20
        %s529 = smul.u32 2, %s528
      $region56: #{encoder_forward.3} parent=35 // pred_fallthru
        _
    $region36: #{encoder_forward.3} parent=5 // pred_fallthru
      _
    %p530 = scmp.le.s32.totalorder 2, %s10
    // Predicated region
    $region57: #{encoder_forward.3} parent=5 // pred_check
      %p531 = pneg %p530
    $region58: #{encoder_forward.3} parent=5 // pred_check_branch
      %533 = sbr.rel (%p531) target = $region60
    $region59: #{encoder_forward.3} parent=5 // pred_region
      %s534 = ssub.s32 %s10, 2
      // Predicated region
      $region61: #{encoder_forward.3} parent=59 // pred_check
        %p535 = pneg %p142
      $region62: #{encoder_forward.3} parent=59 // pred_check_branch
        %537 = sbr.rel (%p535) target = $region64
      $region63: #{encoder_forward.3} parent=59 // pred_region
        %s538 = smul.u32 %s21, %s22
        %s539 = smul.u32 2, %s538
        %p540 = scmp.lt.s32.totalorder %s539, 1
        %s541 = scalar_select %p540, %s539, 1
        %s542 = smul.addr %s541, 2
        %s543 = smul.addr %s542, 8
        %s544 = scalar_lea.vmem %s4, %s543
      $region64: #{encoder_forward.3} parent=59 // pred_fallthru
        _
    $region60: #{encoder_forward.3} parent=5 // pred_fallthru
      _
  $region6: #{encoder_forward.3} parent=0 // loop_footer
    %s14 = sadd.s32 1, %s10
  $region7: #{encoder_forward.3} parent=0 // loop_footer_branch
    %9 = sbr.rel target = $region3
  $region8: #{encoder_forward.3} parent=0 // loop_exit
    _

</llo_original>
